<compile_context>
chip_gen: v7x
topology: tpu7x:2x2x1
jax: 0.10.0
libtpu: 0.0.40
codegen_flags: <defaults>
</compile_context>

<pallas_src>
import functools
from math import sqrt

import jax
import jax.numpy as jnp
from jax.experimental import pallas as pl
from jax.experimental.pallas import tpu as pltpu


def _mha_kernel(rv_ref, cb_ref, q_ref, k_ref, v_ref,
                wq_ref, bq_ref, wk_ref, bk_ref, wv_ref, bv_ref,
                woe_ref, bout_ref, out_ref, *, batch_block):
    bf16 = jnp.bfloat16
    f32 = jnp.float32

    # Resident weights (constant index_map -> fetched once for the whole grid).
    wq = wq_ref[...]            # (H, E, D) bf16, 1/sqrt(D) pre-folded
    wk = wk_ref[...]            # (H, E, D) bf16
    wv = wv_ref[...]            # (H, E, D) bf16
    woe = woe_ref[...]          # (H, D, E) bf16   W_oe[h] = Wo[h] @ Wf[h]
    bq = bq_ref[...]            # (H, 1, D) f32 (pre-scaled by 1/sqrt(D))
    bk = bk_ref[...]            # (H, 1, D) f32
    bv = bv_ref[...]            # (H, 1, D) f32
    bout = bout_ref[...]        # (1, E)    f32   b_out = bf + sum_h bo[h] @ Wf[h]
    H = wq.shape[0]

    for b in range(batch_block):             # small, trace-time unrolled
        x_q = q_ref[b]                       # (S, E) bf16
        x_k = k_ref[b]
        x_v = v_ref[b]
        rv = rv_ref[b]                       # (S, 1) f32 query-row validity
        cb = cb_ref[b]                       # (1, S) f32 key-column bias (0 / -1e30)
        S, E = x_q.shape

        # Head-major projections as batched bf16 matmuls with f32 accumulation.
        # No per-head lane slicing and no concatenation anywhere in the kernel.
        q_hm = jnp.einsum('hse,hed->hsd', jnp.broadcast_to(x_q[None], (H, S, E)),
                          wq, preferred_element_type=f32) + bq        # (H, S, D)
        k_hm = jnp.einsum('hse,hed->hsd', jnp.broadcast_to(x_k[None], (H, S, E)),
                          wk, preferred_element_type=f32) + bk        # (H, S, D)
        v_hm = jnp.einsum('hse,hed->hsd', jnp.broadcast_to(x_v[None], (H, S, E)),
                          wv, preferred_element_type=f32) + bv        # (H, S, D)

        # Scores (scale already folded into Wq/bq); key padding as an additive
        # large-negative column bias.
        scores = jnp.einsum('hqd,hkd->hqk', q_hm.astype(bf16), k_hm.astype(bf16),
                            preferred_element_type=f32) + cb[None]    # (H, S, S)

        # f32 softmax; reciprocal on the EUP; zeroing invalid query rows (or
        # rows whose keys are fully masked) reproduces the reference's
        # masked_fill(-inf) + softmax + nan_to_num exactly.
        m = jnp.max(scores, axis=-1, keepdims=True)
        e = jnp.exp(scores - m)
        denom = jnp.sum(e, axis=-1, keepdims=True)
        w = e * pl.reciprocal(denom, approx=True) * rv[None]          # (H, S, S)

        attn = jnp.einsum('hqk,hkd->hqd', w.astype(bf16), v_hm.astype(bf16),
                          preferred_element_type=f32)                 # (H, S, D)

        # Fused epilogue (per-head output linear + concat + final linear) as a
        # batched matmul + head-sum ("accumulate-epilogue" form).
        partial = jnp.einsum('hsd,hde->hse', attn.astype(bf16), woe,
                             preferred_element_type=f32)              # (H, S, E)
        out_ref[b] = (jnp.sum(partial, axis=0) + bout).astype(out_ref.dtype)


def decoder_multi_head_attention(query, key, value, params,
                                 query_mask=None, key_mask=None,
                                 *, batch_block=None):
    B, S, E = query.shape
    H, _, D = params["wq"].shape
    f32, bf16 = jnp.float32, jnp.bfloat16

    if batch_block is None:
        # At most two grid steps: one per TensorCore on megacore (v7x) parts,
        # while amortizing the ~0.35us/step overhead.  On single-TC v5e/v6e
        # pass batch_block=B to fold the whole batch into one step.
        batch_block = B if (B % 2 or B == 1) else B // 2
    assert B % batch_block == 0, "batch_block must divide the batch"
    grid = (B // batch_block,)

    inv_scale = 1.0 / sqrt(D)

    # ---- Host-side folding (done once per call): bf16 MXU operands, f32 bias.
    wq_s = (params["wq"].astype(f32) * inv_scale).astype(bf16)          # (H,E,D)
    bq_s = (params["bq"].astype(f32) * inv_scale).reshape(H, 1, D)
    wk_s = params["wk"].astype(bf16)
    bk_s = params["bk"].astype(f32).reshape(H, 1, D)
    wv_s = params["wv"].astype(bf16)
    bv_s = params["bv"].astype(f32).reshape(H, 1, D)

    # Pre-composed epilogue: W_oe[h] = Wo[h] @ Wf[h], biases folded.
    woe = jnp.einsum("hdo,hoe->hde", params["wo"].astype(f32),
                     params["wf"].astype(f32)).astype(bf16)             # (H,D,E)
    bout = (params["bf"].astype(f32).reshape(1, E)
            + jnp.einsum("ho,hoe->e", params["bo"].astype(f32),
                         params["wf"].astype(f32)).reshape(1, E))       # (1,E) f32

    # ---- Host-precomputed masks (O(S) traffic, no in-kernel mask logic).
    if query_mask is None or key_mask is None:
        query_mask = jnp.ones((B, S), f32)
        key_mask = jnp.ones((B, S), f32)
    qm = (query_mask.astype(f32) != 0.0).astype(f32)                    # (B,S)
    km = (key_mask.astype(f32) != 0.0).astype(f32)                      # (B,S)
    key_any = jnp.max(km, axis=-1, keepdims=True)                       # (B,1)
    row_valid = (qm * key_any).reshape(B, S, 1)                         # (B,S,1)
    col_bias = ((km - 1.0) * 1e30).reshape(B, 1, S)                     # 0 / -1e30

    kernel = functools.partial(_mha_kernel, batch_block=batch_block)
    const3 = lambda b: (0, 0, 0)

    grid_spec = pltpu.PrefetchScalarGridSpec(
        num_scalar_prefetch=0,
        grid=grid,
        in_specs=[
            pl.BlockSpec((batch_block, S, 1), lambda b: (b, 0, 0)),   # row_valid
            pl.BlockSpec((batch_block, 1, S), lambda b: (b, 0, 0)),   # col_bias
            pl.BlockSpec((batch_block, S, E), lambda b: (b, 0, 0)),   # query
            pl.BlockSpec((batch_block, S, E), lambda b: (b, 0, 0)),   # key
            pl.BlockSpec((batch_block, S, E), lambda b: (b, 0, 0)),   # value
            # Weights / biases: constant index_map -> DMA'd once.
            pl.BlockSpec((H, E, D), const3),                          # Wq (scaled)
            pl.BlockSpec((H, 1, D), const3),                          # bq (scaled)
            pl.BlockSpec((H, E, D), const3),                          # Wk
            pl.BlockSpec((H, 1, D), const3),                          # bk
            pl.BlockSpec((H, E, D), const3),                          # Wv
            pl.BlockSpec((H, 1, D), const3),                          # bv
            pl.BlockSpec((H, D, E), const3),                          # W_oe = Wo@Wf
            pl.BlockSpec((1, E), lambda b: (0, 0)),                   # b_out
        ],
        out_specs=pl.BlockSpec((batch_block, S, E), lambda b: (b, 0, 0)),
    )

    return pl.pallas_call(
        kernel,
        out_shape=jax.ShapeDtypeStruct((B, S, E), jnp.float32),
        grid_spec=grid_spec,
        compiler_params=pltpu.CompilerParams(
            dimension_semantics=("parallel",)),
    )(row_valid, col_bias,
      query.astype(bf16), key.astype(bf16), value.astype(bf16),
      wq_s, bq_s, wk_s, bk_s, wv_s, bv_s, woe, bout)


def reference(query, key, value, params, query_mask, key_mask):
    """Pure-JAX fp32 mirror of the PyTorch forward (for verification)."""
    H, E, D = params["wq"].shape
    O = params["wo"].shape[2]
    mask = jnp.einsum("bq,bk->bqk", query_mask, key_mask)
    outs = []
    for h in range(H):
        q = query @ params["wq"][h] + params["bq"][h]
        k = key @ params["wk"][h] + params["bk"][h]
        v = value @ params["wv"][h] + params["bv"][h]
        scores = jnp.einsum("bqd,bkd->bqk", q, k) / sqrt(D)
        scores = jnp.where(mask == 0.0, -jnp.inf, scores)
        w = jax.nn.softmax(scores, axis=-1)
        w = jnp.nan_to_num(w)
        o = jnp.einsum("bqk,bkd->bqd", w, v)
        outs.append(o @ params["wo"][h] + params["bo"][h])
    x = jnp.concatenate(outs, axis=-1)                      # (B, S, H*O)
    wf_full = params["wf"].reshape(H * O, E)
    return x @ wf_full + params["bf"][0]


if __name__ == "__main__":
    # config.hidden_size = 32, config.num_attention_heads = 4 -> head_dim = 8
    B, S, E = 2, 8, 32
    H = 4
    D = E // H          # head_dim
    O = 16              # output_dim per head

    key0 = jax.random.PRNGKey(0)
    ks = jax.random.split(key0, 16)

    params = {
        "wq": 0.1 * jax.random.normal(ks[0], (H, E, D), jnp.float32),
        "bq": 0.1 * jax.random.normal(ks[1], (H, D), jnp.float32),
        "wk": 0.1 * jax.random.normal(ks[2], (H, E, D), jnp.float32),
        "bk": 0.1 * jax.random.normal(ks[3], (H, D), jnp.float32),
        "wv": 0.1 * jax.random.normal(ks[4], (H, E, D), jnp.float32),
        "bv": 0.1 * jax.random.normal(ks[5], (H, D), jnp.float32),
        "wo": 0.1 * jax.random.normal(ks[6], (H, D, O), jnp.float32),
        "bo": 0.1 * jax.random.normal(ks[7], (H, O), jnp.float32),
        "wf": 0.1 * jax.random.normal(ks[8], (H, O, E), jnp.float32),
        "bf": 0.1 * jax.random.normal(ks[9], (1, E), jnp.float32),
    }

    query = jax.random.normal(ks[10], (B, S, E), jnp.float32)
    key_ = jax.random.normal(ks[11], (B, S, E), jnp.float32)
    value = jax.random.normal(ks[12], (B, S, E), jnp.float32)

    # Padding-style masks; include fully-masked positions to exercise the
    # nan_to_num-equivalent row zeroing.
    query_mask = jnp.ones((B, S), jnp.float32).at[0, 7].set(0.0)
    key_mask = jnp.ones((B, S), jnp.float32).at[1, 6:].set(0.0)

    out = decoder_multi_head_attention(query, key_, value, params,
                                       query_mask=query_mask, key_mask=key_mask)
    out = jax.block_until_ready(out)

    ref = reference(query, key_, value, params, query_mask, key_mask)
    assert out.shape == (B, S, E)
    # bf16 MXU operands + approximate reciprocal -> looser than the fp32 path.
    assert jnp.allclose(out, ref, atol=2e-2, rtol=2e-2), \
        f"max abs err = {jnp.max(jnp.abs(out - ref))}"

    print("KERNEL_OK")
</pallas_src>

<mosaic_0001>
module attributes {stable_mosaic.version = 11 : i64} {
  func.func @_mha_kernel(%arg0: i32, %arg1: memref<1x8x1xf32, #tpu.memory_space<vmem>>, %arg2: memref<1x1x8xf32, #tpu.memory_space<vmem>>, %arg3: memref<1x8x32xbf16, #tpu.memory_space<vmem>>, %arg4: memref<1x8x32xbf16, #tpu.memory_space<vmem>>, %arg5: memref<1x8x32xbf16, #tpu.memory_space<vmem>>, %arg6: memref<4x32x8xbf16, #tpu.memory_space<vmem>>, %arg7: memref<4x1x8xf32, #tpu.memory_space<vmem>>, %arg8: memref<4x32x8xbf16, #tpu.memory_space<vmem>>, %arg9: memref<4x1x8xf32, #tpu.memory_space<vmem>>, %arg10: memref<4x32x8xbf16, #tpu.memory_space<vmem>>, %arg11: memref<4x1x8xf32, #tpu.memory_space<vmem>>, %arg12: memref<4x8x32xbf16, #tpu.memory_space<vmem>>, %arg13: memref<1x32xf32, #tpu.memory_space<vmem>>, %arg14: memref<1x8x32xf32, #tpu.memory_space<vmem>>) attributes {dimension_semantics = [#tpu.dimension_semantics<parallel>], iteration_bounds = array<i64: 2>, scalar_prefetch = 0 : i64, scratch_operands = 0 : i64, tpu.core_type = #tpu.core_type<tc>, window_params = [{transform_indices = @transform_0, window_bounds = array<i64: 1, 8, 1>}, {transform_indices = @transform_1, window_bounds = array<i64: 1, 1, 8>}, {transform_indices = @transform_2, window_bounds = array<i64: 1, 8, 32>}, {transform_indices = @transform_3, window_bounds = array<i64: 1, 8, 32>}, {transform_indices = @transform_4, window_bounds = array<i64: 1, 8, 32>}, {pipeline_mode = #tpu.pipeline_mode<synchronous>, transform_indices = @transform_5, window_bounds = array<i64: 4, 32, 8>}, {pipeline_mode = #tpu.pipeline_mode<synchronous>, transform_indices = @transform_6, window_bounds = array<i64: 4, 1, 8>}, {pipeline_mode = #tpu.pipeline_mode<synchronous>, transform_indices = @transform_7, window_bounds = array<i64: 4, 32, 8>}, {pipeline_mode = #tpu.pipeline_mode<synchronous>, transform_indices = @transform_8, window_bounds = array<i64: 4, 1, 8>}, {pipeline_mode = #tpu.pipeline_mode<synchronous>, transform_indices = @transform_9, window_bounds = array<i64: 4, 32, 8>}, {pipeline_mode = #tpu.pipeline_mode<synchronous>, transform_indices = @transform_10, window_bounds = array<i64: 4, 1, 8>}, {pipeline_mode = #tpu.pipeline_mode<synchronous>, transform_indices = @transform_11, window_bounds = array<i64: 4, 8, 32>}, {pipeline_mode = #tpu.pipeline_mode<synchronous>, transform_indices = @transform_12, window_bounds = array<i64: 1, 32>}, {transform_indices = @transform_13, window_bounds = array<i64: 1, 8, 32>}]} {
    %c0 = arith.constant 0 : index
    %c0_0 = arith.constant 0 : index
    %c0_1 = arith.constant 0 : index
    %0 = vector.load %arg6[%c0, %c0_0, %c0_1] : memref<4x32x8xbf16, #tpu.memory_space<vmem>>, vector<4x32x8xbf16>
    %c0_2 = arith.constant 0 : index
    %c0_3 = arith.constant 0 : index
    %c0_4 = arith.constant 0 : index
    %1 = vector.load %arg8[%c0_2, %c0_3, %c0_4] : memref<4x32x8xbf16, #tpu.memory_space<vmem>>, vector<4x32x8xbf16>
    %c0_5 = arith.constant 0 : index
    %c0_6 = arith.constant 0 : index
    %c0_7 = arith.constant 0 : index
    %2 = vector.load %arg10[%c0_5, %c0_6, %c0_7] : memref<4x32x8xbf16, #tpu.memory_space<vmem>>, vector<4x32x8xbf16>
    %c0_8 = arith.constant 0 : index
    %c0_9 = arith.constant 0 : index
    %c0_10 = arith.constant 0 : index
    %3 = vector.load %arg12[%c0_8, %c0_9, %c0_10] : memref<4x8x32xbf16, #tpu.memory_space<vmem>>, vector<4x8x32xbf16>
    %c0_11 = arith.constant 0 : index
    %c0_12 = arith.constant 0 : index
    %c0_13 = arith.constant 0 : index
    %4 = vector.load %arg7[%c0_11, %c0_12, %c0_13] : memref<4x1x8xf32, #tpu.memory_space<vmem>>, vector<4x1x8xf32>
    %c0_14 = arith.constant 0 : index
    %c0_15 = arith.constant 0 : index
    %c0_16 = arith.constant 0 : index
    %5 = vector.load %arg9[%c0_14, %c0_15, %c0_16] : memref<4x1x8xf32, #tpu.memory_space<vmem>>, vector<4x1x8xf32>
    %c0_17 = arith.constant 0 : index
    %c0_18 = arith.constant 0 : index
    %c0_19 = arith.constant 0 : index
    %6 = vector.load %arg11[%c0_17, %c0_18, %c0_19] : memref<4x1x8xf32, #tpu.memory_space<vmem>>, vector<4x1x8xf32>
    %c0_20 = arith.constant 0 : index
    %c0_21 = arith.constant 0 : index
    %7 = vector.load %arg13[%c0_20, %c0_21] : memref<1x32xf32, #tpu.memory_space<vmem>>, vector<1x32xf32>
    %c0_22 = arith.constant 0 : index
    %c0_23 = arith.constant 0 : index
    %c0_24 = arith.constant 0 : index
    %8 = vector.load %arg3[%c0_22, %c0_23, %c0_24] : memref<1x8x32xbf16, #tpu.memory_space<vmem>>, vector<1x8x32xbf16>
    %9 = vector.shape_cast %8 : vector<1x8x32xbf16> to vector<8x32xbf16>
    %c0_25 = arith.constant 0 : index
    %c0_26 = arith.constant 0 : index
    %c0_27 = arith.constant 0 : index
    %10 = vector.load %arg4[%c0_25, %c0_26, %c0_27] : memref<1x8x32xbf16, #tpu.memory_space<vmem>>, vector<1x8x32xbf16>
    %11 = vector.shape_cast %10 : vector<1x8x32xbf16> to vector<8x32xbf16>
    %c0_28 = arith.constant 0 : index
    %c0_29 = arith.constant 0 : index
    %c0_30 = arith.constant 0 : index
    %12 = vector.load %arg5[%c0_28, %c0_29, %c0_30] : memref<1x8x32xbf16, #tpu.memory_space<vmem>>, vector<1x8x32xbf16>
    %13 = vector.shape_cast %12 : vector<1x8x32xbf16> to vector<8x32xbf16>
    %c0_31 = arith.constant 0 : index
    %c0_32 = arith.constant 0 : index
    %c0_33 = arith.constant 0 : index
    %14 = vector.load %arg1[%c0_31, %c0_32, %c0_33] : memref<1x8x1xf32, #tpu.memory_space<vmem>>, vector<1x8x1xf32>
    %15 = vector.shape_cast %14 : vector<1x8x1xf32> to vector<8x1xf32>
    %c0_34 = arith.constant 0 : index
    %c0_35 = arith.constant 0 : index
    %c0_36 = arith.constant 0 : index
    %16 = vector.load %arg2[%c0_34, %c0_35, %c0_36] : memref<1x1x8xf32, #tpu.memory_space<vmem>>, vector<1x1x8xf32>
    %17 = vector.shape_cast %16 : vector<1x1x8xf32> to vector<1x8xf32>
    %18 = vector.shape_cast %9 : vector<8x32xbf16> to vector<1x8x32xbf16>
    %19 = vector.shape_cast %18 : vector<1x8x32xbf16> to vector<1x8x32xbf16>
    %20 = vector.broadcast %19 : vector<1x8x32xbf16> to vector<4x8x32xbf16>
    "tpu.trace_start"() <{level = 10 : i32, message = "hse,hed->hsd"}> : () -> ()
    %cst = arith.constant dense<0.000000e+00> : vector<4x8x8xf32>
    %21 = tpu.matmul %20, %0, %cst {dimension_numbers = #tpu.dot_dimension_numbers<[2], [1], [1], [2], [0, 0, 0, 1, 1, 2], [0], [0]>} : vector<4x8x32xbf16>, vector<4x32x8xbf16>, vector<4x8x8xf32> -> vector<4x8x8xf32>
    "tpu.trace_stop"() : () -> ()
    %22 = vector.broadcast %4 : vector<4x1x8xf32> to vector<4x8x8xf32>
    %23 = arith.addf %21, %22 : vector<4x8x8xf32>
    %24 = vector.shape_cast %11 : vector<8x32xbf16> to vector<1x8x32xbf16>
    %25 = vector.shape_cast %24 : vector<1x8x32xbf16> to vector<1x8x32xbf16>
    %26 = vector.broadcast %25 : vector<1x8x32xbf16> to vector<4x8x32xbf16>
    "tpu.trace_start"() <{level = 10 : i32, message = "hse,hed->hsd"}> : () -> ()
    %cst_37 = arith.constant dense<0.000000e+00> : vector<4x8x8xf32>
    %27 = tpu.matmul %26, %1, %cst_37 {dimension_numbers = #tpu.dot_dimension_numbers<[2], [1], [1], [2], [0, 0, 0, 1, 1, 2], [0], [0]>} : vector<4x8x32xbf16>, vector<4x32x8xbf16>, vector<4x8x8xf32> -> vector<4x8x8xf32>
    "tpu.trace_stop"() : () -> ()
    %28 = vector.broadcast %5 : vector<4x1x8xf32> to vector<4x8x8xf32>
    %29 = arith.addf %27, %28 : vector<4x8x8xf32>
    %30 = vector.shape_cast %13 : vector<8x32xbf16> to vector<1x8x32xbf16>
    %31 = vector.shape_cast %30 : vector<1x8x32xbf16> to vector<1x8x32xbf16>
    %32 = vector.broadcast %31 : vector<1x8x32xbf16> to vector<4x8x32xbf16>
    "tpu.trace_start"() <{level = 10 : i32, message = "hse,hed->hsd"}> : () -> ()
    %cst_38 = arith.constant dense<0.000000e+00> : vector<4x8x8xf32>
    %33 = tpu.matmul %32, %2, %cst_38 {dimension_numbers = #tpu.dot_dimension_numbers<[2], [1], [1], [2], [0, 0, 0, 1, 1, 2], [0], [0]>} : vector<4x8x32xbf16>, vector<4x32x8xbf16>, vector<4x8x8xf32> -> vector<4x8x8xf32>
    "tpu.trace_stop"() : () -> ()
    %34 = vector.broadcast %6 : vector<4x1x8xf32> to vector<4x8x8xf32>
    %35 = arith.addf %33, %34 : vector<4x8x8xf32>
    %36 = arith.truncf %23 : vector<4x8x8xf32> to vector<4x8x8xbf16>
    %37 = arith.truncf %29 : vector<4x8x8xf32> to vector<4x8x8xbf16>
    "tpu.trace_start"() <{level = 10 : i32, message = "hqd,hkd->hqk"}> : () -> ()
    %cst_39 = arith.constant dense<0.000000e+00> : vector<4x8x8xf32>
    %38 = tpu.matmul %36, %37, %cst_39 {dimension_numbers = #tpu.dot_dimension_numbers<[2], [2], [1], [1], [0, 0, 0, 1, 1, 1], [0], [0]>} : vector<4x8x8xbf16>, vector<4x8x8xbf16>, vector<4x8x8xf32> -> vector<4x8x8xf32>
    "tpu.trace_stop"() : () -> ()
    %39 = vector.shape_cast %17 : vector<1x8xf32> to vector<1x1x8xf32>
    %40 = vector.broadcast %39 : vector<1x1x8xf32> to vector<4x8x8xf32>
    %41 = arith.addf %38, %40 : vector<4x8x8xf32>
    %cst_40 = arith.constant dense<0xFF800000> : vector<4x8xf32>
    %42 = vector.multi_reduction <maximumf>, %41, %cst_40 [2] : vector<4x8x8xf32> to vector<4x8xf32>
    %43 = vector.shape_cast %42 : vector<4x8xf32> to vector<4x8x1xf32>
    %44 = vector.broadcast %43 : vector<4x8x1xf32> to vector<4x8x8xf32>
    %45 = arith.subf %41, %44 : vector<4x8x8xf32>
    %46 = math.exp %45 : vector<4x8x8xf32>
    %cst_41 = arith.constant dense<0.000000e+00> : vector<4x8xf32>
    %47 = vector.multi_reduction <add>, %46, %cst_41 [2] : vector<4x8x8xf32> to vector<4x8xf32>
    %48 = vector.shape_cast %47 : vector<4x8xf32> to vector<4x8x1xf32>
    %49 = tpu.reciprocal %48 {approx = true} : vector<4x8x1xf32> -> vector<4x8x1xf32>
    %50 = vector.broadcast %49 : vector<4x8x1xf32> to vector<4x8x8xf32>
    %51 = arith.mulf %46, %50 : vector<4x8x8xf32>
    %52 = vector.shape_cast %15 : vector<8x1xf32> to vector<1x8x1xf32>
    %53 = vector.broadcast %52 : vector<1x8x1xf32> to vector<4x8x8xf32>
    %54 = arith.mulf %51, %53 : vector<4x8x8xf32>
    %55 = arith.truncf %54 : vector<4x8x8xf32> to vector<4x8x8xbf16>
    %56 = arith.truncf %35 : vector<4x8x8xf32> to vector<4x8x8xbf16>
    "tpu.trace_start"() <{level = 10 : i32, message = "hqk,hkd->hqd"}> : () -> ()
    %cst_42 = arith.constant dense<0.000000e+00> : vector<4x8x8xf32>
    %57 = tpu.matmul %55, %56, %cst_42 {dimension_numbers = #tpu.dot_dimension_numbers<[2], [1], [1], [2], [0, 0, 0, 1, 1, 2], [0], [0]>} : vector<4x8x8xbf16>, vector<4x8x8xbf16>, vector<4x8x8xf32> -> vector<4x8x8xf32>
    "tpu.trace_stop"() : () -> ()
    %58 = arith.truncf %57 : vector<4x8x8xf32> to vector<4x8x8xbf16>
    "tpu.trace_start"() <{level = 10 : i32, message = "hsd,hde->hse"}> : () -> ()
    %cst_43 = arith.constant dense<0.000000e+00> : vector<4x8x32xf32>
    %59 = tpu.matmul %58, %3, %cst_43 {dimension_numbers = #tpu.dot_dimension_numbers<[2], [1], [1], [2], [0, 0, 0, 1, 1, 2], [0], [0]>} : vector<4x8x8xbf16>, vector<4x8x32xbf16>, vector<4x8x32xf32> -> vector<4x8x32xf32>
    "tpu.trace_stop"() : () -> ()
    %cst_44 = arith.constant dense<0.000000e+00> : vector<8x32xf32>
    %60 = vector.multi_reduction <add>, %59, %cst_44 [0] : vector<4x8x32xf32> to vector<8x32xf32>
    %61 = vector.broadcast %7 : vector<1x32xf32> to vector<8x32xf32>
    %62 = arith.addf %60, %61 : vector<8x32xf32>
    %c0_45 = arith.constant 0 : index
    %c0_46 = arith.constant 0 : index
    %c0_47 = arith.constant 0 : index
    %63 = vector.load %arg14[%c0_45, %c0_46, %c0_47] : memref<1x8x32xf32, #tpu.memory_space<vmem>>, vector<1x8x32xf32>
    %64 = vector.shape_cast %63 : vector<1x8x32xf32> to vector<8x32xf32>
    %65 = vector.shape_cast %62 : vector<8x32xf32> to vector<1x8x32xf32>
    tpu.vector_store %arg14[%c0_45, %c0_46, %c0_47], %65 {strides = array<i32>} : memref<1x8x32xf32, #tpu.memory_space<vmem>>, vector<1x8x32xf32>,
    return
  }
  func.func @transform_0(%arg0: i32) -> (i32, i32, i32) {
    %c0_i32 = arith.constant 0 : i32
    %c0_i32_0 = arith.constant 0 : i32
    %c0_i32_1 = arith.constant 0 : i32
    return %arg0, %c0_i32, %c0_i32_0 : i32, i32, i32
  }
  func.func @transform_1(%arg0: i32) -> (i32, i32, i32) {
    %c0_i32 = arith.constant 0 : i32
    %c0_i32_0 = arith.constant 0 : i32
    %c0_i32_1 = arith.constant 0 : i32
    return %arg0, %c0_i32, %c0_i32_0 : i32, i32, i32
  }
  func.func @transform_2(%arg0: i32) -> (i32, i32, i32) {
    %c0_i32 = arith.constant 0 : i32
    %c0_i32_0 = arith.constant 0 : i32
    %c0_i32_1 = arith.constant 0 : i32
    return %arg0, %c0_i32, %c0_i32_0 : i32, i32, i32
  }
  func.func @transform_3(%arg0: i32) -> (i32, i32, i32) {
    %c0_i32 = arith.constant 0 : i32
    %c0_i32_0 = arith.constant 0 : i32
    %c0_i32_1 = arith.constant 0 : i32
    return %arg0, %c0_i32, %c0_i32_0 : i32, i32, i32
  }
  func.func @transform_4(%arg0: i32) -> (i32, i32, i32) {
    %c0_i32 = arith.constant 0 : i32
    %c0_i32_0 = arith.constant 0 : i32
    %c0_i32_1 = arith.constant 0 : i32
    return %arg0, %c0_i32, %c0_i32_0 : i32, i32, i32
  }
  func.func @transform_5(%arg0: i32) -> (i32, i32, i32) {
    %c0_i32 = arith.constant 0 : i32
    %c0_i32_0 = arith.constant 0 : i32
    %c0_i32_1 = arith.constant 0 : i32
    %c0_i32_2 = arith.constant 0 : i32
    return %c0_i32, %c0_i32_0, %c0_i32_1 : i32, i32, i32
  }
  func.func @transform_6(%arg0: i32) -> (i32, i32, i32) {
    %c0_i32 = arith.constant 0 : i32
    %c0_i32_0 = arith.constant 0 : i32
    %c0_i32_1 = arith.constant 0 : i32
    %c0_i32_2 = arith.constant 0 : i32
    return %c0_i32, %c0_i32_0, %c0_i32_1 : i32, i32, i32
  }
  func.func @transform_7(%arg0: i32) -> (i32, i32, i32) {
    %c0_i32 = arith.constant 0 : i32
    %c0_i32_0 = arith.constant 0 : i32
    %c0_i32_1 = arith.constant 0 : i32
    %c0_i32_2 = arith.constant 0 : i32
    return %c0_i32, %c0_i32_0, %c0_i32_1 : i32, i32, i32
  }
  func.func @transform_8(%arg0: i32) -> (i32, i32, i32) {
    %c0_i32 = arith.constant 0 : i32
    %c0_i32_0 = arith.constant 0 : i32
    %c0_i32_1 = arith.constant 0 : i32
    %c0_i32_2 = arith.constant 0 : i32
    return %c0_i32, %c0_i32_0, %c0_i32_1 : i32, i32, i32
  }
  func.func @transform_9(%arg0: i32) -> (i32, i32, i32) {
    %c0_i32 = arith.constant 0 : i32
    %c0_i32_0 = arith.constant 0 : i32
    %c0_i32_1 = arith.constant 0 : i32
    %c0_i32_2 = arith.constant 0 : i32
    return %c0_i32, %c0_i32_0, %c0_i32_1 : i32, i32, i32
  }
  func.func @transform_10(%arg0: i32) -> (i32, i32, i32) {
    %c0_i32 = arith.constant 0 : i32
    %c0_i32_0 = arith.constant 0 : i32
    %c0_i32_1 = arith.constant 0 : i32
    %c0_i32_2 = arith.constant 0 : i32
    return %c0_i32, %c0_i32_0, %c0_i32_1 : i32, i32, i32
  }
  func.func @transform_11(%arg0: i32) -> (i32, i32, i32) {
    %c0_i32 = arith.constant 0 : i32
    %c0_i32_0 = arith.constant 0 : i32
    %c0_i32_1 = arith.constant 0 : i32
    %c0_i32_2 = arith.constant 0 : i32
    return %c0_i32, %c0_i32_0, %c0_i32_1 : i32, i32, i32
  }
  func.func @transform_12(%arg0: i32) -> (i32, i32) {
    %c0_i32 = arith.constant 0 : i32
    %c0_i32_0 = arith.constant 0 : i32
    %c0_i32_1 = arith.constant 0 : i32
    return %c0_i32, %c0_i32_0 : i32, i32
  }
  func.func @transform_13(%arg0: i32) -> (i32, i32, i32) {
    %c0_i32 = arith.constant 0 : i32
    %c0_i32_0 = arith.constant 0 : i32
    %c0_i32_1 = arith.constant 0 : i32
    return %arg0, %c0_i32, %c0_i32_0 : i32, i32, i32
  }
}

</mosaic_0001>

<llo_original>
// kernel: tpu_custom_call.1
$region0: #{tpu_custom_call.1}
  #allocation0 [shape = 'u32[]', space=smem, size = 0x4, offset = 0x4, fixed_abs, tag = 'smem constant byte address 0x4 - core index']
  #allocation1 [shape = 'u32[144,128]{1,0:T(1,128)}', space=vmem, size = 0x12000, scoped, tag = 'internal scratch']
  %s0 = inlined_call_operand.vmem [shape: f32[2,8,1], index: 0, kind: input, shape index: {}]
  %s1 = inlined_call_operand.vmem [shape: f32[2,1,8], index: 1, kind: input, shape index: {}]
  %s2 = inlined_call_operand.vmem [shape: bf16[2,8,32], index: 2, kind: input, shape index: {}]
  %s3 = inlined_call_operand.vmem [shape: bf16[2,8,32], index: 3, kind: input, shape index: {}]
  %s4 = inlined_call_operand.vmem [shape: bf16[2,8,32], index: 4, kind: input, shape index: {}]
  %s5 = inlined_call_operand.vmem [shape: bf16[4,32,8], index: 5, kind: input, shape index: {}]
  %s6 = inlined_call_operand.vmem [shape: f32[4,1,8], index: 6, kind: input, shape index: {}]
  %s7 = inlined_call_operand.vmem [shape: bf16[4,32,8], index: 7, kind: input, shape index: {}]
  %s8 = inlined_call_operand.vmem [shape: f32[4,1,8], index: 8, kind: input, shape index: {}]
  %s9 = inlined_call_operand.vmem [shape: bf16[4,32,8], index: 9, kind: input, shape index: {}]
  %s10 = inlined_call_operand.vmem [shape: f32[4,1,8], index: 10, kind: input, shape index: {}]
  %s11 = inlined_call_operand.vmem [shape: bf16[4,8,32], index: 11, kind: input, shape index: {}]
  %s12 = inlined_call_operand.vmem [shape: f32[1,32], index: 12, kind: input, shape index: {}]
  %s13 = inlined_call_operand.hbm [shape: f32[2,8,32], index: 13, kind: output, shape index: {}]
  %s14 = sld [smem:[#allocation0]]
  $region85: #{tpu_custom_call.1} parent=0
    _
  %s16 = ssub.s32 1, %s14
  %s17 = scalar_select 0, %s16, %s14
  $region1: #{tpu_custom_call.1} parent=0
    #allocation2 [shape = 'u8[8192]{0}', space=vmem, size = 0x2000, scoped, tag = 'output window, operand 0']
    #allocation3 [shape = 's32[2]{0}', space=sflag, size = 0x8, scoped, tag = 'scoped memory for tpu_custom_call.1']
    %18 = vsyncpa [#allocation3], 0
    %s19 = scalar_lea.sflag [#allocation3], 1
    %20 = vsyncpa %s19, 0
    loop: start=0, step=1, limit=4
    $region2: #{tpu_custom_call.1} parent=1 // loop_pre_header
      _
    $region3: #{tpu_custom_call.1} parent=1 // loop_header
      %s22 = sphi 0, %s26
      %p23 = scmp.ge.s32.totalorder %s22, 4
      %s32 = sphi 0, %s34
      %s35 = sphi 0, %s32
      %s36 = sphi 0, %s35
      %s52 = sphi 0, %s36
      %s58 = sphi 0, %s60
      %s61 = sphi 0, %s58
      %s62 = sphi 0, %s61
      %s78 = sphi 0, %s62
      %s84 = sphi 0, %s86
      %s87 = sphi 0, %s84
      %s88 = sphi 0, %s87
      %s104 = sphi 0, %s88
      %s110 = sphi 0, %s112
      %s113 = sphi 0, %s110
      %s114 = sphi 0, %s113
      %s130 = sphi 0, %s114
      %s136 = sphi 0, %s138
      %s139 = sphi 0, %s136
      %s140 = sphi 0, %s139
      %s156 = sphi 0, %s140
      %s160 = sphi 0, %s160
      %s162 = sphi 0, %s160
      %s163 = sphi 0, %s162
      %s177 = sphi 0, %s163
      %s181 = sphi 0, %s181
      %s183 = sphi 0, %s181
      %s184 = sphi 0, %s183
      %s198 = sphi 0, %s184
      %s202 = sphi 0, %s202
      %s204 = sphi 0, %s202
      %s205 = sphi 0, %s204
      %s219 = sphi 0, %s205
      %s223 = sphi 0, %s223
      %s225 = sphi 0, %s223
      %s226 = sphi 0, %s225
      %s240 = sphi 0, %s226
      %s244 = sphi 0, %s244
      %s246 = sphi 0, %s244
      %s247 = sphi 0, %s246
      %s261 = sphi 0, %s247
      %s265 = sphi 0, %s265
      %s267 = sphi 0, %s265
      %s268 = sphi 0, %s267
      %s282 = sphi 0, %s268
      %s286 = sphi 0, %s286
      %s288 = sphi 0, %s286
      %s289 = sphi 0, %s288
      %s303 = sphi 0, %s289
      %s307 = sphi 0, %s307
      %s309 = sphi 0, %s307
      %s310 = sphi 0, %s309
      %s324 = sphi 0, %s310
      %s330 = sphi 0, %s332
      %s333 = sphi 0, %s330
      %s334 = sphi 0, %s333
      %s350 = sphi 0, %s334
    $region4: #{tpu_custom_call.1} parent=1 // loop_header_branch
      %25 = sbr.rel (%p23) target = $region8
    $region5: #{tpu_custom_call.1} parent=1 // loop_body
      %s27 = ssub.s32 %s22, 1
      %s28 = ssub.s32 %s22, 2
      %s29 = sadd.s32 %s22, 1
      %s30 = ssub.s32 %s22, %s29
      %p31 = scmp.eq.s32.totalorder %s30, 0
      %s33 = sadd.s32 %s32, 1
      %s34 = scalar_select %p31, %s32, %s33
      %p37 = pneg %p31
      %p38 = scmp.eq.s32.totalorder %s22, 1
      %p39 = por %p37, %p38
      %p40 = scmp.ne.s32.totalorder %s32, %s35
      %p41 = scmp.eq.s32.totalorder %s22, 0
      %p42 = por %p40, %p41
      %p43 = scmp.ne.s32.totalorder %s32, %s35
      %p44 = scmp.eq.s32.totalorder %s27, 1
      %p45 = por %p43, %p44
      %p46 = scmp.ne.s32.totalorder %s35, %s36
      %p47 = scmp.eq.s32.totalorder %s27, 0
      %p48 = por %p46, %p47
      %p49 = scmp.ne.s32.totalorder %s35, %s36
      %p50 = scmp.eq.s32.totalorder %s28, 1
      %p51 = por %p49, %p50
      %p53 = scmp.ne.s32.totalorder %s36, %s52
      %p54 = scmp.eq.s32.totalorder %s28, 0
      %p55 = por %p53, %p54
      %s56 = ssub.s32 %s22, %s29
      %p57 = scmp.eq.s32.totalorder %s56, 0
      %s59 = sadd.s32 %s58, 1
      %s60 = scalar_select %p57, %s58, %s59
      %p63 = pneg %p57
      %p64 = scmp.eq.s32.totalorder %s22, 1
      %p65 = por %p63, %p64
      %p66 = scmp.ne.s32.totalorder %s58, %s61
      %p67 = scmp.eq.s32.totalorder %s22, 0
      %p68 = por %p66, %p67
      %p69 = scmp.ne.s32.totalorder %s58, %s61
      %p70 = scmp.eq.s32.totalorder %s27, 1
      %p71 = por %p69, %p70
      %p72 = scmp.ne.s32.totalorder %s61, %s62
      %p73 = scmp.eq.s32.totalorder %s27, 0
      %p74 = por %p72, %p73
      %p75 = scmp.ne.s32.totalorder %s61, %s62
      %p76 = scmp.eq.s32.totalorder %s28, 1
      %p77 = por %p75, %p76
      %p79 = scmp.ne.s32.totalorder %s62, %s78
      %p80 = scmp.eq.s32.totalorder %s28, 0
      %p81 = por %p79, %p80
      %s82 = ssub.s32 %s22, %s29
      %p83 = scmp.eq.s32.totalorder %s82, 0
      %s85 = sadd.s32 %s84, 1
      %s86 = scalar_select %p83, %s84, %s85
      %p89 = pneg %p83
      %p90 = scmp.eq.s32.totalorder %s22, 1
      %p91 = por %p89, %p90
      %p92 = scmp.ne.s32.totalorder %s84, %s87
      %p93 = scmp.eq.s32.totalorder %s22, 0
      %p94 = por %p92, %p93
      %p95 = scmp.ne.s32.totalorder %s84, %s87
      %p96 = scmp.eq.s32.totalorder %s27, 1
      %p97 = por %p95, %p96
      %p98 = scmp.ne.s32.totalorder %s87, %s88
      %p99 = scmp.eq.s32.totalorder %s27, 0
      %p100 = por %p98, %p99
      %p101 = scmp.ne.s32.totalorder %s87, %s88
      %p102 = scmp.eq.s32.totalorder %s28, 1
      %p103 = por %p101, %p102
      %p105 = scmp.ne.s32.totalorder %s88, %s104
      %p106 = scmp.eq.s32.totalorder %s28, 0
      %p107 = por %p105, %p106
      %s108 = ssub.s32 %s22, %s29
      %p109 = scmp.eq.s32.totalorder %s108, 0
      %s111 = sadd.s32 %s110, 1
      %s112 = scalar_select %p109, %s110, %s111
      %p115 = pneg %p109
      %p116 = scmp.eq.s32.totalorder %s22, 1
      %p117 = por %p115, %p116
      %p118 = scmp.ne.s32.totalorder %s110, %s113
      %p119 = scmp.eq.s32.totalorder %s22, 0
      %p120 = por %p118, %p119
      %p121 = scmp.ne.s32.totalorder %s110, %s113
      %p122 = scmp.eq.s32.totalorder %s27, 1
      %p123 = por %p121, %p122
      %p124 = scmp.ne.s32.totalorder %s113, %s114
      %p125 = scmp.eq.s32.totalorder %s27, 0
      %p126 = por %p124, %p125
      %p127 = scmp.ne.s32.totalorder %s113, %s114
      %p128 = scmp.eq.s32.totalorder %s28, 1
      %p129 = por %p127, %p128
      %p131 = scmp.ne.s32.totalorder %s114, %s130
      %p132 = scmp.eq.s32.totalorder %s28, 0
      %p133 = por %p131, %p132
      %s134 = ssub.s32 %s22, %s29
      %p135 = scmp.eq.s32.totalorder %s134, 0
      %s137 = sadd.s32 %s136, 1
      %s138 = scalar_select %p135, %s136, %s137
      %p141 = pneg %p135
      %p142 = scmp.eq.s32.totalorder %s22, 1
      %p143 = por %p141, %p142
      %p144 = scmp.ne.s32.totalorder %s136, %s139
      %p145 = scmp.eq.s32.totalorder %s22, 0
      %p146 = por %p144, %p145
      %p147 = scmp.ne.s32.totalorder %s136, %s139
      %p148 = scmp.eq.s32.totalorder %s27, 1
      %p149 = por %p147, %p148
      %p150 = scmp.ne.s32.totalorder %s139, %s140
      %p151 = scmp.eq.s32.totalorder %s27, 0
      %p152 = por %p150, %p151
      %p153 = scmp.ne.s32.totalorder %s139, %s140
      %p154 = scmp.eq.s32.totalorder %s28, 1
      %p155 = por %p153, %p154
      %p157 = scmp.ne.s32.totalorder %s140, %s156
      %p158 = scmp.eq.s32.totalorder %s28, 0
      %p159 = por %p157, %p158
      %s161 = sadd.s32 %s160, 1
      %p164 = scmp.eq.s32.totalorder %s22, 1
      %p165 = scmp.ne.s32.totalorder %s160, %s162
      %p166 = scmp.eq.s32.totalorder %s22, 0
      %p167 = por %p165, %p166
      %p168 = scmp.ne.s32.totalorder %s160, %s162
      %p169 = scmp.eq.s32.totalorder %s27, 1
      %p170 = por %p168, %p169
      %p171 = scmp.ne.s32.totalorder %s162, %s163
      %p172 = scmp.eq.s32.totalorder %s27, 0
      %p173 = por %p171, %p172
      %p174 = scmp.ne.s32.totalorder %s162, %s163
      %p175 = scmp.eq.s32.totalorder %s28, 1
      %p176 = por %p174, %p175
      %p178 = scmp.ne.s32.totalorder %s163, %s177
      %p179 = scmp.eq.s32.totalorder %s28, 0
      %p180 = por %p178, %p179
      %s182 = sadd.s32 %s181, 1
      %p185 = scmp.eq.s32.totalorder %s22, 1
      %p186 = scmp.ne.s32.totalorder %s181, %s183
      %p187 = scmp.eq.s32.totalorder %s22, 0
      %p188 = por %p186, %p187
      %p189 = scmp.ne.s32.totalorder %s181, %s183
      %p190 = scmp.eq.s32.totalorder %s27, 1
      %p191 = por %p189, %p190
      %p192 = scmp.ne.s32.totalorder %s183, %s184
      %p193 = scmp.eq.s32.totalorder %s27, 0
      %p194 = por %p192, %p193
      %p195 = scmp.ne.s32.totalorder %s183, %s184
      %p196 = scmp.eq.s32.totalorder %s28, 1
      %p197 = por %p195, %p196
      %p199 = scmp.ne.s32.totalorder %s184, %s198
      %p200 = scmp.eq.s32.totalorder %s28, 0
      %p201 = por %p199, %p200
      %s203 = sadd.s32 %s202, 1
      %p206 = scmp.eq.s32.totalorder %s22, 1
      %p207 = scmp.ne.s32.totalorder %s202, %s204
      %p208 = scmp.eq.s32.totalorder %s22, 0
      %p209 = por %p207, %p208
      %p210 = scmp.ne.s32.totalorder %s202, %s204
      %p211 = scmp.eq.s32.totalorder %s27, 1
      %p212 = por %p210, %p211
      %p213 = scmp.ne.s32.totalorder %s204, %s205
      %p214 = scmp.eq.s32.totalorder %s27, 0
      %p215 = por %p213, %p214
      %p216 = scmp.ne.s32.totalorder %s204, %s205
      %p217 = scmp.eq.s32.totalorder %s28, 1
      %p218 = por %p216, %p217
      %p220 = scmp.ne.s32.totalorder %s205, %s219
      %p221 = scmp.eq.s32.totalorder %s28, 0
      %p222 = por %p220, %p221
      %s224 = sadd.s32 %s223, 1
      %p227 = scmp.eq.s32.totalorder %s22, 1
      %p228 = scmp.ne.s32.totalorder %s223, %s225
      %p229 = scmp.eq.s32.totalorder %s22, 0
      %p230 = por %p228, %p229
      %p231 = scmp.ne.s32.totalorder %s223, %s225
      %p232 = scmp.eq.s32.totalorder %s27, 1
      %p233 = por %p231, %p232
      %p234 = scmp.ne.s32.totalorder %s225, %s226
      %p235 = scmp.eq.s32.totalorder %s27, 0
      %p236 = por %p234, %p235
      %p237 = scmp.ne.s32.totalorder %s225, %s226
      %p238 = scmp.eq.s32.totalorder %s28, 1
      %p239 = por %p237, %p238
      %p241 = scmp.ne.s32.totalorder %s226, %s240
      %p242 = scmp.eq.s32.totalorder %s28, 0
      %p243 = por %p241, %p242
      %s245 = sadd.s32 %s244, 1
      %p248 = scmp.eq.s32.totalorder %s22, 1
      %p249 = scmp.ne.s32.totalorder %s244, %s246
      %p250 = scmp.eq.s32.totalorder %s22, 0
      %p251 = por %p249, %p250
      %p252 = scmp.ne.s32.totalorder %s244, %s246
      %p253 = scmp.eq.s32.totalorder %s27, 1
      %p254 = por %p252, %p253
      %p255 = scmp.ne.s32.totalorder %s246, %s247
      %p256 = scmp.eq.s32.totalorder %s27, 0
      %p257 = por %p255, %p256
      %p258 = scmp.ne.s32.totalorder %s246, %s247
      %p259 = scmp.eq.s32.totalorder %s28, 1
      %p260 = por %p258, %p259
      %p262 = scmp.ne.s32.totalorder %s247, %s261
      %p263 = scmp.eq.s32.totalorder %s28, 0
      %p264 = por %p262, %p263
      %s266 = sadd.s32 %s265, 1
      %p269 = scmp.eq.s32.totalorder %s22, 1
      %p270 = scmp.ne.s32.totalorder %s265, %s267
      %p271 = scmp.eq.s32.totalorder %s22, 0
      %p272 = por %p270, %p271
      %p273 = scmp.ne.s32.totalorder %s265, %s267
      %p274 = scmp.eq.s32.totalorder %s27, 1
      %p275 = por %p273, %p274
      %p276 = scmp.ne.s32.totalorder %s267, %s268
      %p277 = scmp.eq.s32.totalorder %s27, 0
      %p278 = por %p276, %p277
      %p279 = scmp.ne.s32.totalorder %s267, %s268
      %p280 = scmp.eq.s32.totalorder %s28, 1
      %p281 = por %p279, %p280
      %p283 = scmp.ne.s32.totalorder %s268, %s282
      %p284 = scmp.eq.s32.totalorder %s28, 0
      %p285 = por %p283, %p284
      %s287 = sadd.s32 %s286, 1
      %p290 = scmp.eq.s32.totalorder %s22, 1
      %p291 = scmp.ne.s32.totalorder %s286, %s288
      %p292 = scmp.eq.s32.totalorder %s22, 0
      %p293 = por %p291, %p292
      %p294 = scmp.ne.s32.totalorder %s286, %s288
      %p295 = scmp.eq.s32.totalorder %s27, 1
      %p296 = por %p294, %p295
      %p297 = scmp.ne.s32.totalorder %s288, %s289
      %p298 = scmp.eq.s32.totalorder %s27, 0
      %p299 = por %p297, %p298
      %p300 = scmp.ne.s32.totalorder %s288, %s289
      %p301 = scmp.eq.s32.totalorder %s28, 1
      %p302 = por %p300, %p301
      %p304 = scmp.ne.s32.totalorder %s289, %s303
      %p305 = scmp.eq.s32.totalorder %s28, 0
      %p306 = por %p304, %p305
      %s308 = sadd.s32 %s307, 1
      %p311 = scmp.eq.s32.totalorder %s22, 1
      %p312 = scmp.ne.s32.totalorder %s307, %s309
      %p313 = scmp.eq.s32.totalorder %s22, 0
      %p314 = por %p312, %p313
      %p315 = scmp.ne.s32.totalorder %s307, %s309
      %p316 = scmp.eq.s32.totalorder %s27, 1
      %p317 = por %p315, %p316
      %p318 = scmp.ne.s32.totalorder %s309, %s310
      %p319 = scmp.eq.s32.totalorder %s27, 0
      %p320 = por %p318, %p319
      %p321 = scmp.ne.s32.totalorder %s309, %s310
      %p322 = scmp.eq.s32.totalorder %s28, 1
      %p323 = por %p321, %p322
      %p325 = scmp.ne.s32.totalorder %s310, %s324
      %p326 = scmp.eq.s32.totalorder %s28, 0
      %p327 = por %p325, %p326
      %s328 = ssub.s32 %s22, %s29
      %p329 = scmp.eq.s32.totalorder %s328, 0
      %s331 = sadd.s32 %s330, 1
      %s332 = scalar_select %p329, %s330, %s331
      %p335 = pneg %p329
      %p336 = scmp.eq.s32.totalorder %s22, 1
      %p337 = por %p335, %p336
      %p338 = scmp.ne.s32.totalorder %s330, %s333
      %p339 = scmp.eq.s32.totalorder %s22, 0
      %p340 = por %p338, %p339
      %p341 = scmp.ne.s32.totalorder %s330, %s333
      %p342 = scmp.eq.s32.totalorder %s27, 1
      %p343 = por %p341, %p342
      %p344 = scmp.ne.s32.totalorder %s333, %s334
      %p345 = scmp.eq.s32.totalorder %s27, 0
      %p346 = por %p344, %p345
      %p347 = scmp.ne.s32.totalorder %s333, %s334
      %p348 = scmp.eq.s32.totalorder %s28, 1
      %p349 = por %p347, %p348
      %p351 = scmp.ne.s32.totalorder %s334, %s350
      %p352 = scmp.eq.s32.totalorder %s28, 0
      %p353 = por %p351, %p352
      %p354 = scmp.le.s32.totalorder 1, %s22
      %p355 = scmp.lt.s32.totalorder %s22, 3
      %p356 = pnand %p354, %p355
      %p357 = pneg %p356
      // Predicated region
      $region9: #{tpu_custom_call.1} parent=5 // pred_check
        _
      $region10: #{tpu_custom_call.1} parent=5 // pred_check_branch
        %359 = sbr.rel (%p356) target = $region12
      $region11: #{tpu_custom_call.1} parent=5 // pred_region
        %s360 = ssub.s32 %s22, 1
        // Predicated region
        $region13: #{tpu_custom_call.1} parent=11 // pred_check
          %p361 = pneg %p173
        $region14: #{tpu_custom_call.1} parent=11 // pred_check_branch
          %363 = sbr.rel (%p361) target = $region16
        $region15: #{tpu_custom_call.1} parent=11 // pred_region
          _
        $region16: #{tpu_custom_call.1} parent=11 // pred_fallthru
          _
        // Predicated region
        $region17: #{tpu_custom_call.1} parent=11 // pred_check
          %p364 = pneg %p194
        $region18: #{tpu_custom_call.1} parent=11 // pred_check_branch
          %366 = sbr.rel (%p364) target = $region20
        $region19: #{tpu_custom_call.1} parent=11 // pred_region
          _
        $region20: #{tpu_custom_call.1} parent=11 // pred_fallthru
          _
        // Predicated region
        $region21: #{tpu_custom_call.1} parent=11 // pred_check
          %p367 = pneg %p215
        $region22: #{tpu_custom_call.1} parent=11 // pred_check_branch
          %369 = sbr.rel (%p367) target = $region24
        $region23: #{tpu_custom_call.1} parent=11 // pred_region
          _
        $region24: #{tpu_custom_call.1} parent=11 // pred_fallthru
          _
        // Predicated region
        $region25: #{tpu_custom_call.1} parent=11 // pred_check
          %p370 = pneg %p236
        $region26: #{tpu_custom_call.1} parent=11 // pred_check_branch
          %372 = sbr.rel (%p370) target = $region28
        $region27: #{tpu_custom_call.1} parent=11 // pred_region
          _
        $region28: #{tpu_custom_call.1} parent=11 // pred_fallthru
          _
        // Predicated region
        $region29: #{tpu_custom_call.1} parent=11 // pred_check
          %p373 = pneg %p257
        $region30: #{tpu_custom_call.1} parent=11 // pred_check_branch
          %375 = sbr.rel (%p373) target = $region32
        $region31: #{tpu_custom_call.1} parent=11 // pred_region
          _
        $region32: #{tpu_custom_call.1} parent=11 // pred_fallthru
          _
        // Predicated region
        $region33: #{tpu_custom_call.1} parent=11 // pred_check
          %p376 = pneg %p278
        $region34: #{tpu_custom_call.1} parent=11 // pred_check_branch
          %378 = sbr.rel (%p376) target = $region36
        $region35: #{tpu_custom_call.1} parent=11 // pred_region
          _
        $region36: #{tpu_custom_call.1} parent=11 // pred_fallthru
          _
        // Predicated region
        $region37: #{tpu_custom_call.1} parent=11 // pred_check
          %p379 = pneg %p299
        $region38: #{tpu_custom_call.1} parent=11 // pred_check_branch
          %381 = sbr.rel (%p379) target = $region40
        $region39: #{tpu_custom_call.1} parent=11 // pred_region
          _
        $region40: #{tpu_custom_call.1} parent=11 // pred_fallthru
          _
        // Predicated region
        $region41: #{tpu_custom_call.1} parent=11 // pred_check
          %p382 = pneg %p320
        $region42: #{tpu_custom_call.1} parent=11 // pred_check_branch
          %384 = sbr.rel (%p382) target = $region44
        $region43: #{tpu_custom_call.1} parent=11 // pred_region
          _
        $region44: #{tpu_custom_call.1} parent=11 // pred_fallthru
          _
      $region12: #{tpu_custom_call.1} parent=5 // pred_fallthru
        _
      %p385 = scmp.lt.s32.totalorder %s22, 2
      // Predicated region
      $region45: #{tpu_custom_call.1} parent=5 // pred_check
        %p386 = pneg %p385
      $region46: #{tpu_custom_call.1} parent=5 // pred_check_branch
        %388 = sbr.rel (%p386) target = $region48
      $region47: #{tpu_custom_call.1} parent=5 // pred_region
        // Predicated region
        $region49: #{tpu_custom_call.1} parent=47 // pred_check
          %p389 = pneg %p42
        $region50: #{tpu_custom_call.1} parent=47 // pred_check_branch
          %391 = sbr.rel (%p389) target = $region52
        $region51: #{tpu_custom_call.1} parent=47 // pred_region
          %p392 = scmp.lt.s32.totalorder %s22, 1
          %s393 = scalar_select %p392, %s22, 1
          %s394 = smul.addr %s393, 8
          %s395 = scalar_lea.vmem %s0, %s394
        $region52: #{tpu_custom_call.1} parent=47 // pred_fallthru
          _
        // Predicated region
        $region53: #{tpu_custom_call.1} parent=47 // pred_check
          %p396 = pneg %p68
        $region54: #{tpu_custom_call.1} parent=47 // pred_check_branch
          %398 = sbr.rel (%p396) target = $region56
        $region55: #{tpu_custom_call.1} parent=47 // pred_region
          %p399 = scmp.lt.s32.totalorder %s22, 1
          %s400 = scalar_select %p399, %s22, 1
          %s401 = scalar_lea.vmem %s1, %s400
        $region56: #{tpu_custom_call.1} parent=47 // pred_fallthru
          _
        // Predicated region
        $region57: #{tpu_custom_call.1} parent=47 // pred_check
          %p402 = pneg %p94
        $region58: #{tpu_custom_call.1} parent=47 // pred_check_branch
          %404 = sbr.rel (%p402) target = $region60
        $region59: #{tpu_custom_call.1} parent=47 // pred_region
          %p405 = scmp.lt.s32.totalorder %s22, 1
          %s406 = scalar_select %p405, %s22, 1
          %s407 = smul.addr %s406, 4
          %s408 = scalar_lea.vmem %s2, %s407
        $region60: #{tpu_custom_call.1} parent=47 // pred_fallthru
          _
        // Predicated region
        $region61: #{tpu_custom_call.1} parent=47 // pred_check
          %p409 = pneg %p120
        $region62: #{tpu_custom_call.1} parent=47 // pred_check_branch
          %411 = sbr.rel (%p409) target = $region64
        $region63: #{tpu_custom_call.1} parent=47 // pred_region
          %p412 = scmp.lt.s32.totalorder %s22, 1
          %s413 = scalar_select %p412, %s22, 1
          %s414 = smul.addr %s413, 4
          %s415 = scalar_lea.vmem %s3, %s414
        $region64: #{tpu_custom_call.1} parent=47 // pred_fallthru
          _
        // Predicated region
        $region65: #{tpu_custom_call.1} parent=47 // pred_check
          %p416 = pneg %p146
        $region66: #{tpu_custom_call.1} parent=47 // pred_check_branch
          %418 = sbr.rel (%p416) target = $region68
        $region67: #{tpu_custom_call.1} parent=47 // pred_region
          %p419 = scmp.lt.s32.totalorder %s22, 1
          %s420 = scalar_select %p419, %s22, 1
          %s421 = smul.addr %s420, 4
          %s422 = scalar_lea.vmem %s4, %s421
        $region68: #{tpu_custom_call.1} parent=47 // pred_fallthru
          _
      $region48: #{tpu_custom_call.1} parent=5 // pred_fallthru
        _
      %p423 = scmp.le.s32.totalorder 1, %s22
      %p424 = scmp.lt.s32.totalorder %s22, 3
      %p425 = pnand %p423, %p424
      %p426 = pneg %p425
      // Predicated region
      $region69: #{tpu_custom_call.1} parent=5 // pred_check
        _
      $region70: #{tpu_custom_call.1} parent=5 // pred_check_branch
        %428 = sbr.rel (%p425) target = $region72
      $region71: #{tpu_custom_call.1} parent=5 // pred_region
        %s429 = ssub.s32 %s22, 1
        %p430 = scmp.lt.s32.totalorder %s27, 1
        %s431 = scalar_select %p430, %s27, 1
        %s432 = smul.addr %s431, 8
        %s433 = scalar_lea.vmem %s0, %s432
        %p434 = pneg %p48
        %p435 = pneg %p45
        %p436 = scmp.lt.s32.totalorder %s27, 1
        %s437 = scalar_select %p436, %s27, 1
        %s438 = scalar_lea.vmem %s1, %s437
        %p439 = pneg %p74
        %p440 = pneg %p71
        %p441 = scmp.lt.s32.totalorder %s27, 1
        %s442 = scalar_select %p441, %s27, 1
        %s443 = smul.addr %s442, 4
        %s444 = scalar_lea.vmem %s2, %s443
        %p445 = pneg %p100
        %p446 = pneg %p97
        %p447 = scmp.lt.s32.totalorder %s27, 1
        %s448 = scalar_select %p447, %s27, 1
        %s449 = smul.addr %s448, 4
        %s450 = scalar_lea.vmem %s3, %s449
        %p451 = pneg %p126
        %p452 = pneg %p123
        %p453 = scmp.lt.s32.totalorder %s27, 1
        %s454 = scalar_select %p453, %s27, 1
        %s455 = smul.addr %s454, 4
        %s456 = scalar_lea.vmem %s4, %s455
        %p457 = pneg %p152
        %p458 = pneg %p149
        %p459 = pneg %p173
        %p460 = pneg %p170
        %p461 = pneg %p194
        %p462 = pneg %p191
        %p463 = pneg %p215
        %p464 = pneg %p212
        %p465 = pneg %p236
        %p466 = pneg %p233
        %p467 = pneg %p257
        %p468 = pneg %p254
        %p469 = pneg %p278
        %p470 = pneg %p275
        %p471 = pneg %p299
        %p472 = pneg %p296
        %p473 = pneg %p320
        %p474 = pneg %p317
        %p475 = pneg %p346
        %p476 = pneg %p343
        %s477 = sand.u32 %s333, 1
        %s478 = scalar_lea.sflag [#allocation3], %s477
        %s479 = sand.u32 %s333, 1
        %s480 = smul.addr %s479, 8
        %s481 = scalar_lea.vmem [#allocation2], %s480
        %p482 = scmp.lt.s32.totalorder %s27, 1
        %s483 = scalar_select %p482, %s27, 1
        %s484 = smul.addr %s483, 8
        %s485 = scalar_lea.vmem %s0, %s484
        %p486 = scmp.lt.s32.totalorder %s27, 1
        %s487 = scalar_select %p486, %s27, 1
        %s488 = scalar_lea.vmem %s1, %s487
        %p489 = scmp.lt.s32.totalorder %s27, 1
        %s490 = scalar_select %p489, %s27, 1
        %s491 = smul.addr %s490, 4
        %s492 = scalar_lea.vmem %s2, %s491
        %p493 = scmp.lt.s32.totalorder %s27, 1
        %s494 = scalar_select %p493, %s27, 1
        %s495 = smul.addr %s494, 4
        %s496 = scalar_lea.vmem %s3, %s495
        %p497 = scmp.lt.s32.totalorder %s27, 1
        %s498 = scalar_select %p497, %s27, 1
        %s499 = smul.addr %s498, 4
        %s500 = scalar_lea.vmem %s4, %s499
        %v502 = vld [vmem:[%s5] sm:$0xf]
        %v503 = vld [vmem:[%s5 + $0x4] sm:$0xf]
        %v504 = vld [vmem:[%s5 + $0x8] sm:$0xf]
        %v505 = vld [vmem:[%s5 + $0xc] sm:$0xf]
        %v506 = vld [vmem:[%s5 + $0x10] sm:$0xf]
        %v507 = vld [vmem:[%s5 + $0x14] sm:$0xf]
        %v508 = vld [vmem:[%s5 + $0x18] sm:$0xf]
        %v509 = vld [vmem:[%s5 + $0x1c] sm:$0xf]
        %v510 = vld [vmem:[%s5 + $0x20] sm:$0xf]
        %v511 = vld [vmem:[%s5 + $0x24] sm:$0xf]
        %v512 = vld [vmem:[%s5 + $0x28] sm:$0xf]
        %v513 = vld [vmem:[%s5 + $0x2c] sm:$0xf]
        %v514 = vld [vmem:[%s5 + $0x30] sm:$0xf]
        %v515 = vld [vmem:[%s5 + $0x34] sm:$0xf]
        %v516 = vld [vmem:[%s5 + $0x38] sm:$0xf]
        %v517 = vld [vmem:[%s5 + $0x3c] sm:$0xf]
        %v518 = vld [vmem:[%s7] sm:$0xf]
        %v519 = vld [vmem:[%s7 + $0x4] sm:$0xf]
        %v520 = vld [vmem:[%s7 + $0x8] sm:$0xf]
        %v521 = vld [vmem:[%s7 + $0xc] sm:$0xf]
        %v522 = vld [vmem:[%s7 + $0x10] sm:$0xf]
        %v523 = vld [vmem:[%s7 + $0x14] sm:$0xf]
        %v524 = vld [vmem:[%s7 + $0x18] sm:$0xf]
        %v525 = vld [vmem:[%s7 + $0x1c] sm:$0xf]
        %v526 = vld [vmem:[%s7 + $0x20] sm:$0xf]
        %v527 = vld [vmem:[%s7 + $0x24] sm:$0xf]
        %v528 = vld [vmem:[%s7 + $0x28] sm:$0xf]
        %v529 = vld [vmem:[%s7 + $0x2c] sm:$0xf]
        %v530 = vld [vmem:[%s7 + $0x30] sm:$0xf]
        %v531 = vld [vmem:[%s7 + $0x34] sm:$0xf]
        %v532 = vld [vmem:[%s7 + $0x38] sm:$0xf]
        %v533 = vld [vmem:[%s7 + $0x3c] sm:$0xf]
        %v534 = vld [vmem:[%s9] sm:$0xf]
        %v535 = vld [vmem:[%s9 + $0x4] sm:$0xf]
        %v536 = vld [vmem:[%s9 + $0x8] sm:$0xf]
        %v537 = vld [vmem:[%s9 + $0xc] sm:$0xf]
        %v538 = vld [vmem:[%s9 + $0x10] sm:$0xf]
        %v539 = vld [vmem:[%s9 + $0x14] sm:$0xf]
        %v540 = vld [vmem:[%s9 + $0x18] sm:$0xf]
        %v541 = vld [vmem:[%s9 + $0x1c] sm:$0xf]
        %v542 = vld [vmem:[%s9 + $0x20] sm:$0xf]
        %v543 = vld [vmem:[%s9 + $0x24] sm:$0xf]
        %v544 = vld [vmem:[%s9 + $0x28] sm:$0xf]
        %v545 = vld [vmem:[%s9 + $0x2c] sm:$0xf]
        %v546 = vld [vmem:[%s9 + $0x30] sm:$0xf]
        %v547 = vld [vmem:[%s9 + $0x34] sm:$0xf]
        %v548 = vld [vmem:[%s9 + $0x38] sm:$0xf]
        %v549 = vld [vmem:[%s9 + $0x3c] sm:$0xf]
        %v550 = vld [vmem:[%s11] sm:$0xf]
        %v551 = vld [vmem:[%s11 + $0x4] sm:$0xf]
        %v552 = vld [vmem:[%s11 + $0x8] sm:$0xf]
        %v553 = vld [vmem:[%s11 + $0xc] sm:$0xf]
        %v554 = vld [vmem:[%s6] sm:$0x1]
        %v555 = vld [vmem:[%s6 + $0x1] sm:$0x1]
        %v556 = vld [vmem:[%s6 + $0x2] sm:$0x1]
        %v557 = vld [vmem:[%s6 + $0x3] sm:$0x1]
        %v558 = vld [vmem:[%s8] sm:$0x1]
        %v559 = vld [vmem:[%s8 + $0x1] sm:$0x1]
        %v560 = vld [vmem:[%s8 + $0x2] sm:$0x1]
        %v561 = vld [vmem:[%s8 + $0x3] sm:$0x1]
        %v562 = vld [vmem:[%s10] sm:$0x1]
        %v563 = vld [vmem:[%s10 + $0x1] sm:$0x1]
        %v564 = vld [vmem:[%s10 + $0x2] sm:$0x1]
        %v565 = vld [vmem:[%s10 + $0x3] sm:$0x1]
        %v566 = vld [vmem:[%s12] sm:$0x1]
        %v567 = vld [vmem:[%s492] sm:$0xf]
        %v568 = vld [vmem:[%s496] sm:$0xf]
        %v569 = vld [vmem:[%s500] sm:$0xf]
        %v570 = vld [vmem:[%s485] sm:$0xff]
        %v571 = vld [vmem:[%s488] sm:$0x1]
        %v576 = vlaneseq
        %v577 = vshrl.u32 %v576, 7
        %v578 = vsub.s32 0, %v577
        %v579 = vrot.slane %v554, %v578
        %v580 = vlaneseq
        %v581 = vshrl.u32 %v580, 7
        %v582 = vsub.s32 0, %v581
        %v583 = vrot.slane %v555, %v582
        %v584 = vlaneseq
        %v585 = vshrl.u32 %v584, 7
        %v586 = vsub.s32 0, %v585
        %v587 = vrot.slane %v556, %v586
        %v588 = vlaneseq
        %v589 = vshrl.u32 %v588, 7
        %v590 = vsub.s32 0, %v589
        %v591 = vrot.slane %v557, %v590
        %v600 = vunpack.c.l.b16 %v502
        %v601 = vunpack.c.l.b16 %v503
        %v602 = vunpack.c.l.b16 %v504
        %v603 = vunpack.c.l.b16 %v505
        %v604 = vpack.c.b16 %v601, %v600
        %v605 = vpack.c.b16 %v603, %v602
        %vm608 = vcmask 261120
        %v610 = vsel %vm608, %v567, 0
        %612 = vmatprep.subr.bf16.mxu0 0
        %613 = vmatpush1.bf16.msra.mxu0 %v604
        %614 = vmatprep.subr.bf16.mxu0 0
        %615 = vmatpush1.bf16.msra.mxu0 %v605
        %616 = vmatprep.subr.bf16.mxu0 0
        %617 = vmatpush1.bf16.msra.mxu0 0
        %618 = vmatprep.subr.bf16.mxu0 0
        %619 = vmatpush1.bf16.msra.mxu0 0
        %620 = vmatprep.subr.bf16.mxu0 0
        %621 = vmatpush1.bf16.msra.mxu0 0
        %622 = vmatprep.subr.bf16.mxu0 0
        %623 = vmatpush1.bf16.msra.mxu0 0
        %624 = vmatprep.subr.bf16.mxu0 0
        %625 = vmatpush1.bf16.msra.mxu0 0
        %626 = vmatprep.subr.bf16.mxu0 0
        %627 = vmatpush1.bf16.msra.mxu0 0
        %628 = vmatprep.subr.bf16.mxu0 0
        %629 = vmatpush1.bf16.msra.mxu0 0
        %630 = vmatprep.subr.bf16.mxu0 0
        %631 = vmatpush1.bf16.msra.mxu0 0
        %632 = vmatprep.subr.bf16.mxu0 0
        %633 = vmatpush1.bf16.msra.mxu0 0
        %634 = vmatprep.subr.bf16.mxu0 0
        %635 = vmatpush1.bf16.msra.mxu0 0
        %636 = vmatprep.subr.bf16.mxu0 0
        %637 = vmatpush1.bf16.msra.mxu0 0
        %638 = vmatprep.subr.bf16.mxu0 0
        %639 = vmatpush1.bf16.msra.mxu0 0
        %640 = vmatprep.subr.bf16.mxu0 0
        %641 = vmatpush1.bf16.msra.mxu0 0
        %642 = vmatprep.subr.bf16.mxu0 0
        %643 = vmatpush1.bf16.msra.mxu0 0
        %644 = vmatprep.mubr.bf16.mxu0 0
        %645 = vmatmul.mubr.bf16.gmra.mrb[0].mxu0 %v610
        %v646 = vpop.f32.mrb[0].mxu0
        %v647 = vadd.f32 %v579, %v646
        %v648 = vpop.f32.mrb[0].mxu0
        %v649 = vpop.f32.mrb[0].mxu0
        %v650 = vpop.f32.mrb[0].mxu0
        %651 = vdwg.mxu0
        %v656 = vunpack.c.l.b16 %v506
        %v657 = vunpack.c.l.b16 %v507
        %v658 = vunpack.c.l.b16 %v508
        %v659 = vunpack.c.l.b16 %v509
        %v660 = vpack.c.b16 %v657, %v656
        %v661 = vpack.c.b16 %v659, %v658
        %664 = vmatprep.subr.bf16.mxu0 0
        %665 = vmatpush1.bf16.msra.mxu0 %v660
        %666 = vmatprep.subr.bf16.mxu0 0
        %667 = vmatpush1.bf16.msra.mxu0 %v661
        %668 = vmatprep.subr.bf16.mxu0 0
        %669 = vmatpush1.bf16.msra.mxu0 0
        %670 = vmatprep.subr.bf16.mxu0 0
        %671 = vmatpush1.bf16.msra.mxu0 0
        %672 = vmatprep.subr.bf16.mxu0 0
        %673 = vmatpush1.bf16.msra.mxu0 0
        %674 = vmatprep.subr.bf16.mxu0 0
        %675 = vmatpush1.bf16.msra.mxu0 0
        %676 = vmatprep.subr.bf16.mxu0 0
        %677 = vmatpush1.bf16.msra.mxu0 0
        %678 = vmatprep.subr.bf16.mxu0 0
        %679 = vmatpush1.bf16.msra.mxu0 0
        %680 = vmatprep.subr.bf16.mxu0 0
        %681 = vmatpush1.bf16.msra.mxu0 0
        %682 = vmatprep.subr.bf16.mxu0 0
        %683 = vmatpush1.bf16.msra.mxu0 0
        %684 = vmatprep.subr.bf16.mxu0 0
        %685 = vmatpush1.bf16.msra.mxu0 0
        %686 = vmatprep.subr.bf16.mxu0 0
        %687 = vmatpush1.bf16.msra.mxu0 0
        %688 = vmatprep.subr.bf16.mxu0 0
        %689 = vmatpush1.bf16.msra.mxu0 0
        %690 = vmatprep.subr.bf16.mxu0 0
        %691 = vmatpush1.bf16.msra.mxu0 0
        %692 = vmatprep.subr.bf16.mxu0 0
        %693 = vmatpush1.bf16.msra.mxu0 0
        %694 = vmatprep.subr.bf16.mxu0 0
        %695 = vmatpush1.bf16.msra.mxu0 0
        %696 = vmatprep.mubr.bf16.mxu0 0
        %697 = vmatmul.mubr.bf16.gmra.mrb[0].mxu0 %v610
        %v698 = vpop.f32.mrb[0].mxu0
        %v699 = vadd.f32 %v583, %v698
        %v700 = vpop.f32.mrb[0].mxu0
        %v701 = vpop.f32.mrb[0].mxu0
        %v702 = vpop.f32.mrb[0].mxu0
        %703 = vdwg.mxu0
        %v708 = vunpack.c.l.b16 %v510
        %v709 = vunpack.c.l.b16 %v511
        %v710 = vunpack.c.l.b16 %v512
        %v711 = vunpack.c.l.b16 %v513
        %v712 = vpack.c.b16 %v709, %v708
        %v713 = vpack.c.b16 %v711, %v710
        %716 = vmatprep.subr.bf16.mxu0 0
        %717 = vmatpush1.bf16.msra.mxu0 %v712
        %718 = vmatprep.subr.bf16.mxu0 0
        %719 = vmatpush1.bf16.msra.mxu0 %v713
        %720 = vmatprep.subr.bf16.mxu0 0
        %721 = vmatpush1.bf16.msra.mxu0 0
        %722 = vmatprep.subr.bf16.mxu0 0
        %723 = vmatpush1.bf16.msra.mxu0 0
        %724 = vmatprep.subr.bf16.mxu0 0
        %725 = vmatpush1.bf16.msra.mxu0 0
        %726 = vmatprep.subr.bf16.mxu0 0
        %727 = vmatpush1.bf16.msra.mxu0 0
        %728 = vmatprep.subr.bf16.mxu0 0
        %729 = vmatpush1.bf16.msra.mxu0 0
        %730 = vmatprep.subr.bf16.mxu0 0
        %731 = vmatpush1.bf16.msra.mxu0 0
        %732 = vmatprep.subr.bf16.mxu0 0
        %733 = vmatpush1.bf16.msra.mxu0 0
        %734 = vmatprep.subr.bf16.mxu0 0
        %735 = vmatpush1.bf16.msra.mxu0 0
        %736 = vmatprep.subr.bf16.mxu0 0
        %737 = vmatpush1.bf16.msra.mxu0 0
        %738 = vmatprep.subr.bf16.mxu0 0
        %739 = vmatpush1.bf16.msra.mxu0 0
        %740 = vmatprep.subr.bf16.mxu0 0
        %741 = vmatpush1.bf16.msra.mxu0 0
        %742 = vmatprep.subr.bf16.mxu0 0
        %743 = vmatpush1.bf16.msra.mxu0 0
        %744 = vmatprep.subr.bf16.mxu0 0
        %745 = vmatpush1.bf16.msra.mxu0 0
        %746 = vmatprep.subr.bf16.mxu0 0
        %747 = vmatpush1.bf16.msra.mxu0 0
        %748 = vmatprep.mubr.bf16.mxu0 0
        %749 = vmatmul.mubr.bf16.gmra.mrb[0].mxu0 %v610
        %v750 = vpop.f32.mrb[0].mxu0
        %v751 = vadd.f32 %v587, %v750
        %v752 = vpop.f32.mrb[0].mxu0
        %v753 = vpop.f32.mrb[0].mxu0
        %v754 = vpop.f32.mrb[0].mxu0
        %755 = vdwg.mxu0
        %v760 = vunpack.c.l.b16 %v514
        %v761 = vunpack.c.l.b16 %v515
        %v762 = vunpack.c.l.b16 %v516
        %v763 = vunpack.c.l.b16 %v517
        %v764 = vpack.c.b16 %v761, %v760
        %v765 = vpack.c.b16 %v763, %v762
        %768 = vmatprep.subr.bf16.mxu0 0
        %769 = vmatpush1.bf16.msra.mxu0 %v764
        %770 = vmatprep.subr.bf16.mxu0 0
        %771 = vmatpush1.bf16.msra.mxu0 %v765
        %772 = vmatprep.subr.bf16.mxu0 0
        %773 = vmatpush1.bf16.msra.mxu0 0
        %774 = vmatprep.subr.bf16.mxu0 0
        %775 = vmatpush1.bf16.msra.mxu0 0
        %776 = vmatprep.subr.bf16.mxu0 0
        %777 = vmatpush1.bf16.msra.mxu0 0
        %778 = vmatprep.subr.bf16.mxu0 0
        %779 = vmatpush1.bf16.msra.mxu0 0
        %780 = vmatprep.subr.bf16.mxu0 0
        %781 = vmatpush1.bf16.msra.mxu0 0
        %782 = vmatprep.subr.bf16.mxu0 0
        %783 = vmatpush1.bf16.msra.mxu0 0
        %784 = vmatprep.subr.bf16.mxu0 0
        %785 = vmatpush1.bf16.msra.mxu0 0
        %786 = vmatprep.subr.bf16.mxu0 0
        %787 = vmatpush1.bf16.msra.mxu0 0
        %788 = vmatprep.subr.bf16.mxu0 0
        %789 = vmatpush1.bf16.msra.mxu0 0
        %790 = vmatprep.subr.bf16.mxu0 0
        %791 = vmatpush1.bf16.msra.mxu0 0
        %792 = vmatprep.subr.bf16.mxu0 0
        %793 = vmatpush1.bf16.msra.mxu0 0
        %794 = vmatprep.subr.bf16.mxu0 0
        %795 = vmatpush1.bf16.msra.mxu0 0
        %796 = vmatprep.subr.bf16.mxu0 0
        %797 = vmatpush1.bf16.msra.mxu0 0
        %798 = vmatprep.subr.bf16.mxu0 0
        %799 = vmatpush1.bf16.msra.mxu0 0
        %800 = vmatprep.mubr.bf16.mxu0 0
        %801 = vmatmul.mubr.bf16.gmra.mrb[0].mxu0 %v610
        %v802 = vpop.f32.mrb[0].mxu0
        %v803 = vadd.f32 %v591, %v802
        %v804 = vpop.f32.mrb[0].mxu0
        %v805 = vpop.f32.mrb[0].mxu0
        %v806 = vpop.f32.mrb[0].mxu0
        %807 = vdwg.mxu0
        %v812 = vlaneseq
        %v813 = vshrl.u32 %v812, 7
        %v814 = vsub.s32 0, %v813
        %v815 = vrot.slane %v558, %v814
        %v816 = vlaneseq
        %v817 = vshrl.u32 %v816, 7
        %v818 = vsub.s32 0, %v817
        %v819 = vrot.slane %v559, %v818
        %v820 = vlaneseq
        %v821 = vshrl.u32 %v820, 7
        %v822 = vsub.s32 0, %v821
        %v823 = vrot.slane %v560, %v822
        %v824 = vlaneseq
        %v825 = vshrl.u32 %v824, 7
        %v826 = vsub.s32 0, %v825
        %v827 = vrot.slane %v561, %v826
        %v836 = vunpack.c.l.b16 %v518
        %v837 = vunpack.c.l.b16 %v519
        %v838 = vunpack.c.l.b16 %v520
        %v839 = vunpack.c.l.b16 %v521
        %v840 = vpack.c.b16 %v837, %v836
        %v841 = vpack.c.b16 %v839, %v838
        %v845 = vsel %vm608, %v568, 0
        %847 = vmatprep.subr.bf16.mxu0 0
        %848 = vmatpush1.bf16.msra.mxu0 %v840
        %849 = vmatprep.subr.bf16.mxu0 0
        %850 = vmatpush1.bf16.msra.mxu0 %v841
        %851 = vmatprep.subr.bf16.mxu0 0
        %852 = vmatpush1.bf16.msra.mxu0 0
        %853 = vmatprep.subr.bf16.mxu0 0
        %854 = vmatpush1.bf16.msra.mxu0 0
        %855 = vmatprep.subr.bf16.mxu0 0
        %856 = vmatpush1.bf16.msra.mxu0 0
        %857 = vmatprep.subr.bf16.mxu0 0
        %858 = vmatpush1.bf16.msra.mxu0 0
        %859 = vmatprep.subr.bf16.mxu0 0
        %860 = vmatpush1.bf16.msra.mxu0 0
        %861 = vmatprep.subr.bf16.mxu0 0
        %862 = vmatpush1.bf16.msra.mxu0 0
        %863 = vmatprep.subr.bf16.mxu0 0
        %864 = vmatpush1.bf16.msra.mxu0 0
        %865 = vmatprep.subr.bf16.mxu0 0
        %866 = vmatpush1.bf16.msra.mxu0 0
        %867 = vmatprep.subr.bf16.mxu0 0
        %868 = vmatpush1.bf16.msra.mxu0 0
        %869 = vmatprep.subr.bf16.mxu0 0
        %870 = vmatpush1.bf16.msra.mxu0 0
        %871 = vmatprep.subr.bf16.mxu0 0
        %872 = vmatpush1.bf16.msra.mxu0 0
        %873 = vmatprep.subr.bf16.mxu0 0
        %874 = vmatpush1.bf16.msra.mxu0 0
        %875 = vmatprep.subr.bf16.mxu0 0
        %876 = vmatpush1.bf16.msra.mxu0 0
        %877 = vmatprep.subr.bf16.mxu0 0
        %878 = vmatpush1.bf16.msra.mxu0 0
        %879 = vmatprep.mubr.bf16.mxu0 0
        %880 = vmatmul.mubr.bf16.gmra.mrb[0].mxu0 %v845
        %v881 = vpop.f32.mrb[0].mxu0
        %v882 = vadd.f32 %v815, %v881
        %v883 = vpop.f32.mrb[0].mxu0
        %v884 = vpop.f32.mrb[0].mxu0
        %v885 = vpop.f32.mrb[0].mxu0
        %886 = vdwg.mxu0
        %v891 = vunpack.c.l.b16 %v522
        %v892 = vunpack.c.l.b16 %v523
        %v893 = vunpack.c.l.b16 %v524
        %v894 = vunpack.c.l.b16 %v525
        %v895 = vpack.c.b16 %v892, %v891
        %v896 = vpack.c.b16 %v894, %v893
        %899 = vmatprep.subr.bf16.mxu0 0
        %900 = vmatpush1.bf16.msra.mxu0 %v895
        %901 = vmatprep.subr.bf16.mxu0 0
        %902 = vmatpush1.bf16.msra.mxu0 %v896
        %903 = vmatprep.subr.bf16.mxu0 0
        %904 = vmatpush1.bf16.msra.mxu0 0
        %905 = vmatprep.subr.bf16.mxu0 0
        %906 = vmatpush1.bf16.msra.mxu0 0
        %907 = vmatprep.subr.bf16.mxu0 0
        %908 = vmatpush1.bf16.msra.mxu0 0
        %909 = vmatprep.subr.bf16.mxu0 0
        %910 = vmatpush1.bf16.msra.mxu0 0
        %911 = vmatprep.subr.bf16.mxu0 0
        %912 = vmatpush1.bf16.msra.mxu0 0
        %913 = vmatprep.subr.bf16.mxu0 0
        %914 = vmatpush1.bf16.msra.mxu0 0
        %915 = vmatprep.subr.bf16.mxu0 0
        %916 = vmatpush1.bf16.msra.mxu0 0
        %917 = vmatprep.subr.bf16.mxu0 0
        %918 = vmatpush1.bf16.msra.mxu0 0
        %919 = vmatprep.subr.bf16.mxu0 0
        %920 = vmatpush1.bf16.msra.mxu0 0
        %921 = vmatprep.subr.bf16.mxu0 0
        %922 = vmatpush1.bf16.msra.mxu0 0
        %923 = vmatprep.subr.bf16.mxu0 0
        %924 = vmatpush1.bf16.msra.mxu0 0
        %925 = vmatprep.subr.bf16.mxu0 0
        %926 = vmatpush1.bf16.msra.mxu0 0
        %927 = vmatprep.subr.bf16.mxu0 0
        %928 = vmatpush1.bf16.msra.mxu0 0
        %929 = vmatprep.subr.bf16.mxu0 0
        %930 = vmatpush1.bf16.msra.mxu0 0
        %931 = vmatprep.mubr.bf16.mxu0 0
        %932 = vmatmul.mubr.bf16.gmra.mrb[0].mxu0 %v845
        %v933 = vpop.f32.mrb[0].mxu0
        %v934 = vadd.f32 %v819, %v933
        %v935 = vpop.f32.mrb[0].mxu0
        %v936 = vpop.f32.mrb[0].mxu0
        %v937 = vpop.f32.mrb[0].mxu0
        %938 = vdwg.mxu0
        %v943 = vunpack.c.l.b16 %v526
        %v944 = vunpack.c.l.b16 %v527
        %v945 = vunpack.c.l.b16 %v528
        %v946 = vunpack.c.l.b16 %v529
        %v947 = vpack.c.b16 %v944, %v943
        %v948 = vpack.c.b16 %v946, %v945
        %951 = vmatprep.subr.bf16.mxu0 0
        %952 = vmatpush1.bf16.msra.mxu0 %v947
        %953 = vmatprep.subr.bf16.mxu0 0
        %954 = vmatpush1.bf16.msra.mxu0 %v948
        %955 = vmatprep.subr.bf16.mxu0 0
        %956 = vmatpush1.bf16.msra.mxu0 0
        %957 = vmatprep.subr.bf16.mxu0 0
        %958 = vmatpush1.bf16.msra.mxu0 0
        %959 = vmatprep.subr.bf16.mxu0 0
        %960 = vmatpush1.bf16.msra.mxu0 0
        %961 = vmatprep.subr.bf16.mxu0 0
        %962 = vmatpush1.bf16.msra.mxu0 0
        %963 = vmatprep.subr.bf16.mxu0 0
        %964 = vmatpush1.bf16.msra.mxu0 0
        %965 = vmatprep.subr.bf16.mxu0 0
        %966 = vmatpush1.bf16.msra.mxu0 0
        %967 = vmatprep.subr.bf16.mxu0 0
        %968 = vmatpush1.bf16.msra.mxu0 0
        %969 = vmatprep.subr.bf16.mxu0 0
        %970 = vmatpush1.bf16.msra.mxu0 0
        %971 = vmatprep.subr.bf16.mxu0 0
        %972 = vmatpush1.bf16.msra.mxu0 0
        %973 = vmatprep.subr.bf16.mxu0 0
        %974 = vmatpush1.bf16.msra.mxu0 0
        %975 = vmatprep.subr.bf16.mxu0 0
        %976 = vmatpush1.bf16.msra.mxu0 0
        %977 = vmatprep.subr.bf16.mxu0 0
        %978 = vmatpush1.bf16.msra.mxu0 0
        %979 = vmatprep.subr.bf16.mxu0 0
        %980 = vmatpush1.bf16.msra.mxu0 0
        %981 = vmatprep.subr.bf16.mxu0 0
        %982 = vmatpush1.bf16.msra.mxu0 0
        %983 = vmatprep.mubr.bf16.mxu0 0
        %984 = vmatmul.mubr.bf16.gmra.mrb[0].mxu0 %v845
        %v985 = vpop.f32.mrb[0].mxu0
        %v986 = vadd.f32 %v823, %v985
        %v987 = vpop.f32.mrb[0].mxu0
        %v988 = vpop.f32.mrb[0].mxu0
        %v989 = vpop.f32.mrb[0].mxu0
        %990 = vdwg.mxu0
        %v995 = vunpack.c.l.b16 %v530
        %v996 = vunpack.c.l.b16 %v531
        %v997 = vunpack.c.l.b16 %v532
        %v998 = vunpack.c.l.b16 %v533
        %v999 = vpack.c.b16 %v996, %v995
        %v1000 = vpack.c.b16 %v998, %v997
        %1003 = vmatprep.subr.bf16.mxu0 0
        %1004 = vmatpush1.bf16.msra.mxu0 %v999
        %1005 = vmatprep.subr.bf16.mxu0 0
        %1006 = vmatpush1.bf16.msra.mxu0 %v1000
        %1007 = vmatprep.subr.bf16.mxu0 0
        %1008 = vmatpush1.bf16.msra.mxu0 0
        %1009 = vmatprep.subr.bf16.mxu0 0
        %1010 = vmatpush1.bf16.msra.mxu0 0
        %1011 = vmatprep.subr.bf16.mxu0 0
        %1012 = vmatpush1.bf16.msra.mxu0 0
        %1013 = vmatprep.subr.bf16.mxu0 0
        %1014 = vmatpush1.bf16.msra.mxu0 0
        %1015 = vmatprep.subr.bf16.mxu0 0
        %1016 = vmatpush1.bf16.msra.mxu0 0
        %1017 = vmatprep.subr.bf16.mxu0 0
        %1018 = vmatpush1.bf16.msra.mxu0 0
        %1019 = vmatprep.subr.bf16.mxu0 0
        %1020 = vmatpush1.bf16.msra.mxu0 0
        %1021 = vmatprep.subr.bf16.mxu0 0
        %1022 = vmatpush1.bf16.msra.mxu0 0
        %1023 = vmatprep.subr.bf16.mxu0 0
        %1024 = vmatpush1.bf16.msra.mxu0 0
        %1025 = vmatprep.subr.bf16.mxu0 0
        %1026 = vmatpush1.bf16.msra.mxu0 0
        %1027 = vmatprep.subr.bf16.mxu0 0
        %1028 = vmatpush1.bf16.msra.mxu0 0
        %1029 = vmatprep.subr.bf16.mxu0 0
        %1030 = vmatpush1.bf16.msra.mxu0 0
        %1031 = vmatprep.subr.bf16.mxu0 0
        %1032 = vmatpush1.bf16.msra.mxu0 0
        %1033 = vmatprep.subr.bf16.mxu0 0
        %1034 = vmatpush1.bf16.msra.mxu0 0
        %1035 = vmatprep.mubr.bf16.mxu0 0
        %1036 = vmatmul.mubr.bf16.gmra.mrb[0].mxu0 %v845
        %v1037 = vpop.f32.mrb[0].mxu0
        %v1038 = vadd.f32 %v827, %v1037
        %v1039 = vpop.f32.mrb[0].mxu0
        %v1040 = vpop.f32.mrb[0].mxu0
        %v1041 = vpop.f32.mrb[0].mxu0
        %1042 = vdwg.mxu0
        %v1047 = vlaneseq
        %v1048 = vshrl.u32 %v1047, 7
        %v1049 = vsub.s32 0, %v1048
        %v1050 = vrot.slane %v562, %v1049
        %v1051 = vlaneseq
        %v1052 = vshrl.u32 %v1051, 7
        %v1053 = vsub.s32 0, %v1052
        %v1054 = vrot.slane %v563, %v1053
        %v1055 = vlaneseq
        %v1056 = vshrl.u32 %v1055, 7
        %v1057 = vsub.s32 0, %v1056
        %v1058 = vrot.slane %v564, %v1057
        %v1059 = vlaneseq
        %v1060 = vshrl.u32 %v1059, 7
        %v1061 = vsub.s32 0, %v1060
        %v1062 = vrot.slane %v565, %v1061
        %v1071 = vunpack.c.l.b16 %v534
        %v1072 = vunpack.c.l.b16 %v535
        %v1073 = vunpack.c.l.b16 %v536
        %v1074 = vunpack.c.l.b16 %v537
        %v1075 = vpack.c.b16 %v1072, %v1071
        %v1076 = vpack.c.b16 %v1074, %v1073
        %v1080 = vsel %vm608, %v569, 0
        %1082 = vmatprep.subr.bf16.mxu0 0
        %1083 = vmatpush1.bf16.msra.mxu0 %v1075
        %1084 = vmatprep.subr.bf16.mxu0 0
        %1085 = vmatpush1.bf16.msra.mxu0 %v1076
        %1086 = vmatprep.subr.bf16.mxu0 0
        %1087 = vmatpush1.bf16.msra.mxu0 0
        %1088 = vmatprep.subr.bf16.mxu0 0
        %1089 = vmatpush1.bf16.msra.mxu0 0
        %1090 = vmatprep.subr.bf16.mxu0 0
        %1091 = vmatpush1.bf16.msra.mxu0 0
        %1092 = vmatprep.subr.bf16.mxu0 0
        %1093 = vmatpush1.bf16.msra.mxu0 0
        %1094 = vmatprep.subr.bf16.mxu0 0
        %1095 = vmatpush1.bf16.msra.mxu0 0
        %1096 = vmatprep.subr.bf16.mxu0 0
        %1097 = vmatpush1.bf16.msra.mxu0 0
        %1098 = vmatprep.subr.bf16.mxu0 0
        %1099 = vmatpush1.bf16.msra.mxu0 0
        %1100 = vmatprep.subr.bf16.mxu0 0
        %1101 = vmatpush1.bf16.msra.mxu0 0
        %1102 = vmatprep.subr.bf16.mxu0 0
        %1103 = vmatpush1.bf16.msra.mxu0 0
        %1104 = vmatprep.subr.bf16.mxu0 0
        %1105 = vmatpush1.bf16.msra.mxu0 0
        %1106 = vmatprep.subr.bf16.mxu0 0
        %1107 = vmatpush1.bf16.msra.mxu0 0
        %1108 = vmatprep.subr.bf16.mxu0 0
        %1109 = vmatpush1.bf16.msra.mxu0 0
        %1110 = vmatprep.subr.bf16.mxu0 0
        %1111 = vmatpush1.bf16.msra.mxu0 0
        %1112 = vmatprep.subr.bf16.mxu0 0
        %1113 = vmatpush1.bf16.msra.mxu0 0
        %1114 = vmatprep.mubr.bf16.mxu0 0
        %1115 = vmatmul.mubr.bf16.gmra.mrb[0].mxu0 %v1080
        %v1116 = vpop.f32.mrb[0].mxu0
        %v1117 = vadd.f32 %v1050, %v1116
        %v1118 = vpop.f32.mrb[0].mxu0
        %v1119 = vpop.f32.mrb[0].mxu0
        %v1120 = vpop.f32.mrb[0].mxu0
        %1121 = vdwg.mxu0
        %v1126 = vunpack.c.l.b16 %v538
        %v1127 = vunpack.c.l.b16 %v539
        %v1128 = vunpack.c.l.b16 %v540
        %v1129 = vunpack.c.l.b16 %v541
        %v1130 = vpack.c.b16 %v1127, %v1126
        %v1131 = vpack.c.b16 %v1129, %v1128
        %1134 = vmatprep.subr.bf16.mxu0 0
        %1135 = vmatpush1.bf16.msra.mxu0 %v1130
        %1136 = vmatprep.subr.bf16.mxu0 0
        %1137 = vmatpush1.bf16.msra.mxu0 %v1131
        %1138 = vmatprep.subr.bf16.mxu0 0
        %1139 = vmatpush1.bf16.msra.mxu0 0
        %1140 = vmatprep.subr.bf16.mxu0 0
        %1141 = vmatpush1.bf16.msra.mxu0 0
        %1142 = vmatprep.subr.bf16.mxu0 0
        %1143 = vmatpush1.bf16.msra.mxu0 0
        %1144 = vmatprep.subr.bf16.mxu0 0
        %1145 = vmatpush1.bf16.msra.mxu0 0
        %1146 = vmatprep.subr.bf16.mxu0 0
        %1147 = vmatpush1.bf16.msra.mxu0 0
        %1148 = vmatprep.subr.bf16.mxu0 0
        %1149 = vmatpush1.bf16.msra.mxu0 0
        %1150 = vmatprep.subr.bf16.mxu0 0
        %1151 = vmatpush1.bf16.msra.mxu0 0
        %1152 = vmatprep.subr.bf16.mxu0 0
        %1153 = vmatpush1.bf16.msra.mxu0 0
        %1154 = vmatprep.subr.bf16.mxu0 0
        %1155 = vmatpush1.bf16.msra.mxu0 0
        %1156 = vmatprep.subr.bf16.mxu0 0
        %1157 = vmatpush1.bf16.msra.mxu0 0
        %1158 = vmatprep.subr.bf16.mxu0 0
        %1159 = vmatpush1.bf16.msra.mxu0 0
        %1160 = vmatprep.subr.bf16.mxu0 0
        %1161 = vmatpush1.bf16.msra.mxu0 0
        %1162 = vmatprep.subr.bf16.mxu0 0
        %1163 = vmatpush1.bf16.msra.mxu0 0
        %1164 = vmatprep.subr.bf16.mxu0 0
        %1165 = vmatpush1.bf16.msra.mxu0 0
        %1166 = vmatprep.mubr.bf16.mxu0 0
        %1167 = vmatmul.mubr.bf16.gmra.mrb[0].mxu0 %v1080
        %v1168 = vpop.f32.mrb[0].mxu0
        %v1169 = vadd.f32 %v1054, %v1168
        %v1170 = vpop.f32.mrb[0].mxu0
        %v1171 = vpop.f32.mrb[0].mxu0
        %v1172 = vpop.f32.mrb[0].mxu0
        %1173 = vdwg.mxu0
        %v1178 = vunpack.c.l.b16 %v542
        %v1179 = vunpack.c.l.b16 %v543
        %v1180 = vunpack.c.l.b16 %v544
        %v1181 = vunpack.c.l.b16 %v545
        %v1182 = vpack.c.b16 %v1179, %v1178
        %v1183 = vpack.c.b16 %v1181, %v1180
        %1186 = vmatprep.subr.bf16.mxu0 0
        %1187 = vmatpush1.bf16.msra.mxu0 %v1182
        %1188 = vmatprep.subr.bf16.mxu0 0
        %1189 = vmatpush1.bf16.msra.mxu0 %v1183
        %1190 = vmatprep.subr.bf16.mxu0 0
        %1191 = vmatpush1.bf16.msra.mxu0 0
        %1192 = vmatprep.subr.bf16.mxu0 0
        %1193 = vmatpush1.bf16.msra.mxu0 0
        %1194 = vmatprep.subr.bf16.mxu0 0
        %1195 = vmatpush1.bf16.msra.mxu0 0
        %1196 = vmatprep.subr.bf16.mxu0 0
        %1197 = vmatpush1.bf16.msra.mxu0 0
        %1198 = vmatprep.subr.bf16.mxu0 0
        %1199 = vmatpush1.bf16.msra.mxu0 0
        %1200 = vmatprep.subr.bf16.mxu0 0
        %1201 = vmatpush1.bf16.msra.mxu0 0
        %1202 = vmatprep.subr.bf16.mxu0 0
        %1203 = vmatpush1.bf16.msra.mxu0 0
        %1204 = vmatprep.subr.bf16.mxu0 0
        %1205 = vmatpush1.bf16.msra.mxu0 0
        %1206 = vmatprep.subr.bf16.mxu0 0
        %1207 = vmatpush1.bf16.msra.mxu0 0
        %1208 = vmatprep.subr.bf16.mxu0 0
        %1209 = vmatpush1.bf16.msra.mxu0 0
        %1210 = vmatprep.subr.bf16.mxu0 0
        %1211 = vmatpush1.bf16.msra.mxu0 0
        %1212 = vmatprep.subr.bf16.mxu0 0
        %1213 = vmatpush1.bf16.msra.mxu0 0
        %1214 = vmatprep.subr.bf16.mxu0 0
        %1215 = vmatpush1.bf16.msra.mxu0 0
        %1216 = vmatprep.subr.bf16.mxu0 0
        %1217 = vmatpush1.bf16.msra.mxu0 0
        %1218 = vmatprep.mubr.bf16.mxu0 0
        %1219 = vmatmul.mubr.bf16.gmra.mrb[0].mxu0 %v1080
        %v1220 = vpop.f32.mrb[0].mxu0
        %v1221 = vadd.f32 %v1058, %v1220
        %v1222 = vpop.f32.mrb[0].mxu0
        %v1223 = vpop.f32.mrb[0].mxu0
        %v1224 = vpop.f32.mrb[0].mxu0
        %1225 = vdwg.mxu0
        %v1230 = vunpack.c.l.b16 %v546
        %v1231 = vunpack.c.l.b16 %v547
        %v1232 = vunpack.c.l.b16 %v548
        %v1233 = vunpack.c.l.b16 %v549
        %v1234 = vpack.c.b16 %v1231, %v1230
        %v1235 = vpack.c.b16 %v1233, %v1232
        %1238 = vmatprep.subr.bf16.mxu0 0
        %1239 = vmatpush1.bf16.msra.mxu0 %v1234
        %1240 = vmatprep.subr.bf16.mxu0 0
        %1241 = vmatpush1.bf16.msra.mxu0 %v1235
        %1242 = vmatprep.subr.bf16.mxu0 0
        %1243 = vmatpush1.bf16.msra.mxu0 0
        %1244 = vmatprep.subr.bf16.mxu0 0
        %1245 = vmatpush1.bf16.msra.mxu0 0
        %1246 = vmatprep.subr.bf16.mxu0 0
        %1247 = vmatpush1.bf16.msra.mxu0 0
        %1248 = vmatprep.subr.bf16.mxu0 0
        %1249 = vmatpush1.bf16.msra.mxu0 0
        %1250 = vmatprep.subr.bf16.mxu0 0
        %1251 = vmatpush1.bf16.msra.mxu0 0
        %1252 = vmatprep.subr.bf16.mxu0 0
        %1253 = vmatpush1.bf16.msra.mxu0 0
        %1254 = vmatprep.subr.bf16.mxu0 0
        %1255 = vmatpush1.bf16.msra.mxu0 0
        %1256 = vmatprep.subr.bf16.mxu0 0
        %1257 = vmatpush1.bf16.msra.mxu0 0
        %1258 = vmatprep.subr.bf16.mxu0 0
        %1259 = vmatpush1.bf16.msra.mxu0 0
        %1260 = vmatprep.subr.bf16.mxu0 0
        %1261 = vmatpush1.bf16.msra.mxu0 0
        %1262 = vmatprep.subr.bf16.mxu0 0
        %1263 = vmatpush1.bf16.msra.mxu0 0
        %1264 = vmatprep.subr.bf16.mxu0 0
        %1265 = vmatpush1.bf16.msra.mxu0 0
        %1266 = vmatprep.subr.bf16.mxu0 0
        %1267 = vmatpush1.bf16.msra.mxu0 0
        %1268 = vmatprep.subr.bf16.mxu0 0
        %1269 = vmatpush1.bf16.msra.mxu0 0
        %1270 = vmatprep.mubr.bf16.mxu0 0
        %1271 = vmatmul.mubr.bf16.gmra.mrb[0].mxu0 %v1080
        %v1272 = vpop.f32.mrb[0].mxu0
        %v1273 = vadd.f32 %v1062, %v1272
        %v1274 = vpop.f32.mrb[0].mxu0
        %v1275 = vpop.f32.mrb[0].mxu0
        %v1276 = vpop.f32.mrb[0].mxu0
        %1277 = vdwg.mxu0
        %v1278 = vpack.c.bf16 %v647, %v647
        %v1279 = vpack.c.bf16 %v699, %v699
        %v1280 = vpack.c.bf16 %v751, %v751
        %v1281 = vpack.c.bf16 %v803, %v803
        %v1282 = vpack.c.bf16 %v882, %v882
        %v1283 = vpack.c.bf16 %v934, %v934
        %v1284 = vpack.c.bf16 %v986, %v986
        %v1285 = vpack.c.bf16 %v1038, %v1038
        %v1287 = vlaneseq
        %v1288 = vshrl.u32 %v1287, 7
        %v1289 = vsub.s32 0, %v1288
        %v1290 = vrot.slane %v571, %v1289
        %vm1292 = vcmask 64512
        %v1294 = vsel %vm1292, %v1278, 0
        %v1297 = vsel %vm1292, %v1282, 0
        %1299 = vmatprep.subr.bf16.mxu0 0
        %1300 = vmatpush1.bf16.xpose.msra.mxu0 %v1297
        %1301 = vmatprep.subr.bf16.mxu0 0
        %1302 = vmatpush1.bf16.xpose.msra.mxu0 0
        %1303 = vmatprep.subr.bf16.mxu0 0
        %1304 = vmatpush1.bf16.xpose.msra.mxu0 0
        %1305 = vmatprep.subr.bf16.mxu0 0
        %1306 = vmatpush1.bf16.xpose.msra.mxu0 0
        %1307 = vmatprep.subr.bf16.mxu0 0
        %1308 = vmatpush1.bf16.xpose.msra.mxu0 0
        %1309 = vmatprep.subr.bf16.mxu0 0
        %1310 = vmatpush1.bf16.xpose.msra.mxu0 0
        %1311 = vmatprep.subr.bf16.mxu0 0
        %1312 = vmatpush1.bf16.xpose.msra.mxu0 0
        %1313 = vmatprep.subr.bf16.mxu0 0
        %1314 = vmatpush1.bf16.xpose.msra.mxu0 0
        %1315 = vmatprep.subr.bf16.mxu0 0
        %1316 = vmatpush1.bf16.xpose.msra.mxu0 0
        %1317 = vmatprep.subr.bf16.mxu0 0
        %1318 = vmatpush1.bf16.xpose.msra.mxu0 0
        %1319 = vmatprep.subr.bf16.mxu0 0
        %1320 = vmatpush1.bf16.xpose.msra.mxu0 0
        %1321 = vmatprep.subr.bf16.mxu0 0
        %1322 = vmatpush1.bf16.xpose.msra.mxu0 0
        %1323 = vmatprep.subr.bf16.mxu0 0
        %1324 = vmatpush1.bf16.xpose.msra.mxu0 0
        %1325 = vmatprep.subr.bf16.mxu0 0
        %1326 = vmatpush1.bf16.xpose.msra.mxu0 0
        %1327 = vmatprep.subr.bf16.mxu0 0
        %1328 = vmatpush1.bf16.xpose.msra.mxu0 0
        %1329 = vmatprep.subr.bf16.mxu0 0
        %1330 = vmatpush1.bf16.xpose.msra.mxu0 0
        %1331 = vmatprep.mubr.bf16.mxu0 0
        %1332 = vmatmul.mubr.bf16.gmra.mrb[0].mxu0 %v1294
        %v1333 = vpop.f32.mrb[0].mxu0
        %v1334 = vadd.f32 %v1290, %v1333
        %v1335 = vpop.f32.mrb[0].mxu0
        %v1336 = vpop.f32.mrb[0].mxu0
        %v1337 = vpop.f32.mrb[0].mxu0
        %1338 = vdwg.mxu0
        %v1340 = vsel %vm1292, %v1279, 0
        %v1343 = vsel %vm1292, %v1283, 0
        %1345 = vmatprep.subr.bf16.mxu0 0
        %1346 = vmatpush1.bf16.xpose.msra.mxu0 %v1343
        %1347 = vmatprep.subr.bf16.mxu0 0
        %1348 = vmatpush1.bf16.xpose.msra.mxu0 0
        %1349 = vmatprep.subr.bf16.mxu0 0
        %1350 = vmatpush1.bf16.xpose.msra.mxu0 0
        %1351 = vmatprep.subr.bf16.mxu0 0
        %1352 = vmatpush1.bf16.xpose.msra.mxu0 0
        %1353 = vmatprep.subr.bf16.mxu0 0
        %1354 = vmatpush1.bf16.xpose.msra.mxu0 0
        %1355 = vmatprep.subr.bf16.mxu0 0
        %1356 = vmatpush1.bf16.xpose.msra.mxu0 0
        %1357 = vmatprep.subr.bf16.mxu0 0
        %1358 = vmatpush1.bf16.xpose.msra.mxu0 0
        %1359 = vmatprep.subr.bf16.mxu0 0
        %1360 = vmatpush1.bf16.xpose.msra.mxu0 0
        %1361 = vmatprep.subr.bf16.mxu0 0
        %1362 = vmatpush1.bf16.xpose.msra.mxu0 0
        %1363 = vmatprep.subr.bf16.mxu0 0
        %1364 = vmatpush1.bf16.xpose.msra.mxu0 0
        %1365 = vmatprep.subr.bf16.mxu0 0
        %1366 = vmatpush1.bf16.xpose.msra.mxu0 0
        %1367 = vmatprep.subr.bf16.mxu0 0
        %1368 = vmatpush1.bf16.xpose.msra.mxu0 0
        %1369 = vmatprep.subr.bf16.mxu0 0
        %1370 = vmatpush1.bf16.xpose.msra.mxu0 0
        %1371 = vmatprep.subr.bf16.mxu0 0
        %1372 = vmatpush1.bf16.xpose.msra.mxu0 0
        %1373 = vmatprep.subr.bf16.mxu0 0
        %1374 = vmatpush1.bf16.xpose.msra.mxu0 0
        %1375 = vmatprep.subr.bf16.mxu0 0
        %1376 = vmatpush1.bf16.xpose.msra.mxu0 0
        %1377 = vmatprep.mubr.bf16.mxu0 0
        %1378 = vmatmul.mubr.bf16.gmra.mrb[0].mxu0 %v1340
        %v1379 = vpop.f32.mrb[0].mxu0
        %v1380 = vadd.f32 %v1290, %v1379
        %v1381 = vpop.f32.mrb[0].mxu0
        %v1382 = vpop.f32.mrb[0].mxu0
        %v1383 = vpop.f32.mrb[0].mxu0
        %1384 = vdwg.mxu0
        %v1386 = vsel %vm1292, %v1280, 0
        %v1389 = vsel %vm1292, %v1284, 0
        %1391 = vmatprep.subr.bf16.mxu0 0
        %1392 = vmatpush1.bf16.xpose.msra.mxu0 %v1389
        %1393 = vmatprep.subr.bf16.mxu0 0
        %1394 = vmatpush1.bf16.xpose.msra.mxu0 0
        %1395 = vmatprep.subr.bf16.mxu0 0
        %1396 = vmatpush1.bf16.xpose.msra.mxu0 0
        %1397 = vmatprep.subr.bf16.mxu0 0
        %1398 = vmatpush1.bf16.xpose.msra.mxu0 0
        %1399 = vmatprep.subr.bf16.mxu0 0
        %1400 = vmatpush1.bf16.xpose.msra.mxu0 0
        %1401 = vmatprep.subr.bf16.mxu0 0
        %1402 = vmatpush1.bf16.xpose.msra.mxu0 0
        %1403 = vmatprep.subr.bf16.mxu0 0
        %1404 = vmatpush1.bf16.xpose.msra.mxu0 0
        %1405 = vmatprep.subr.bf16.mxu0 0
        %1406 = vmatpush1.bf16.xpose.msra.mxu0 0
        %1407 = vmatprep.subr.bf16.mxu0 0
        %1408 = vmatpush1.bf16.xpose.msra.mxu0 0
        %1409 = vmatprep.subr.bf16.mxu0 0
        %1410 = vmatpush1.bf16.xpose.msra.mxu0 0
        %1411 = vmatprep.subr.bf16.mxu0 0
        %1412 = vmatpush1.bf16.xpose.msra.mxu0 0
        %1413 = vmatprep.subr.bf16.mxu0 0
        %1414 = vmatpush1.bf16.xpose.msra.mxu0 0
        %1415 = vmatprep.subr.bf16.mxu0 0
        %1416 = vmatpush1.bf16.xpose.msra.mxu0 0
        %1417 = vmatprep.subr.bf16.mxu0 0
        %1418 = vmatpush1.bf16.xpose.msra.mxu0 0
        %1419 = vmatprep.subr.bf16.mxu0 0
        %1420 = vmatpush1.bf16.xpose.msra.mxu0 0
        %1421 = vmatprep.subr.bf16.mxu0 0
        %1422 = vmatpush1.bf16.xpose.msra.mxu0 0
        %1423 = vmatprep.mubr.bf16.mxu0 0
        %1424 = vmatmul.mubr.bf16.gmra.mrb[0].mxu0 %v1386
        %v1425 = vpop.f32.mrb[0].mxu0
        %v1426 = vadd.f32 %v1290, %v1425
        %v1427 = vpop.f32.mrb[0].mxu0
        %v1428 = vpop.f32.mrb[0].mxu0
        %v1429 = vpop.f32.mrb[0].mxu0
        %1430 = vdwg.mxu0
        %v1432 = vsel %vm1292, %v1281, 0
        %v1435 = vsel %vm1292, %v1285, 0
        %1437 = vmatprep.subr.bf16.mxu0 0
        %1438 = vmatpush1.bf16.xpose.msra.mxu0 %v1435
        %1439 = vmatprep.subr.bf16.mxu0 0
        %1440 = vmatpush1.bf16.xpose.msra.mxu0 0
        %1441 = vmatprep.subr.bf16.mxu0 0
        %1442 = vmatpush1.bf16.xpose.msra.mxu0 0
        %1443 = vmatprep.subr.bf16.mxu0 0
        %1444 = vmatpush1.bf16.xpose.msra.mxu0 0
        %1445 = vmatprep.subr.bf16.mxu0 0
        %1446 = vmatpush1.bf16.xpose.msra.mxu0 0
        %1447 = vmatprep.subr.bf16.mxu0 0
        %1448 = vmatpush1.bf16.xpose.msra.mxu0 0
        %1449 = vmatprep.subr.bf16.mxu0 0
        %1450 = vmatpush1.bf16.xpose.msra.mxu0 0
        %1451 = vmatprep.subr.bf16.mxu0 0
        %1452 = vmatpush1.bf16.xpose.msra.mxu0 0
        %1453 = vmatprep.subr.bf16.mxu0 0
        %1454 = vmatpush1.bf16.xpose.msra.mxu0 0
        %1455 = vmatprep.subr.bf16.mxu0 0
        %1456 = vmatpush1.bf16.xpose.msra.mxu0 0
        %1457 = vmatprep.subr.bf16.mxu0 0
        %1458 = vmatpush1.bf16.xpose.msra.mxu0 0
        %1459 = vmatprep.subr.bf16.mxu0 0
        %1460 = vmatpush1.bf16.xpose.msra.mxu0 0
        %1461 = vmatprep.subr.bf16.mxu0 0
        %1462 = vmatpush1.bf16.xpose.msra.mxu0 0
        %1463 = vmatprep.subr.bf16.mxu0 0
        %1464 = vmatpush1.bf16.xpose.msra.mxu0 0
        %1465 = vmatprep.subr.bf16.mxu0 0
        %1466 = vmatpush1.bf16.xpose.msra.mxu0 0
        %1467 = vmatprep.subr.bf16.mxu0 0
        %1468 = vmatpush1.bf16.xpose.msra.mxu0 0
        %1469 = vmatprep.mubr.bf16.mxu0 0
        %1470 = vmatmul.mubr.bf16.gmra.mrb[0].mxu0 %v1432
        %v1471 = vpop.f32.mrb[0].mxu0
        %v1472 = vadd.f32 %v1290, %v1471
        %v1473 = vpop.f32.mrb[0].mxu0
        %v1474 = vpop.f32.mrb[0].mxu0
        %v1475 = vpop.f32.mrb[0].mxu0
        %1476 = vdwg.mxu0
        %v1477 = vsel %vm1292, %v1334, -inf
        %1478 = vmax.xlane.f32.xlu0 %v1477
        %v1479 = vpop.xlane.xlu0 %1478
        %v1480 = vsel %vm1292, %v1380, -inf
        %1481 = vmax.xlane.f32.xlu0 %v1480
        %v1482 = vpop.xlane.xlu0 %1481
        %v1483 = vsel %vm1292, %v1426, -inf
        %1484 = vmax.xlane.f32.xlu0 %v1483
        %v1485 = vpop.xlane.xlu0 %1484
        %v1486 = vsel %vm1292, %v1472, -inf
        %1487 = vmax.xlane.f32.xlu0 %v1486
        %v1488 = vpop.xlane.xlu0 %1487
        %v1489 = vsub.f32 %v1334, %v1479
        %v1490 = vsub.f32 %v1380, %v1482
        %v1491 = vsub.f32 %v1426, %v1485
        %v1492 = vsub.f32 %v1472, %v1488
        %v1493 = vmul.f32 %v1489, 1.442695
        %v1494 = vpow.pop %v1493
        %v1495 = vmul.f32 %v1490, 1.442695
        %v1496 = vpow.pop %v1495
        %v1497 = vmul.f32 %v1491, 1.442695
        %v1498 = vpow.pop %v1497
        %v1499 = vmul.f32 %v1492, 1.442695
        %v1500 = vpow.pop %v1499
        %v1501 = vsel %vm1292, %v1494, 0.0
        %1502 = vadd.xlane.f32.xlu0 %v1501
        %v1503 = vpop.xlane.xlu0 %1502
        %v1504 = vsel %vm1292, %v1496, 0.0
        %1505 = vadd.xlane.f32.xlu0 %v1504
        %v1506 = vpop.xlane.xlu0 %1505
        %v1507 = vsel %vm1292, %v1498, 0.0
        %1508 = vadd.xlane.f32.xlu0 %v1507
        %v1509 = vpop.xlane.xlu0 %1508
        %v1510 = vsel %vm1292, %v1500, 0.0
        %1511 = vadd.xlane.f32.xlu0 %v1510
        %v1512 = vpop.xlane.xlu0 %1511
        %v1513 = vrcp.pop %v1503
        %v1514 = vrcp.pop %v1506
        %v1515 = vrcp.pop %v1509
        %v1516 = vrcp.pop %v1512
        %v1517 = vmul.f32 %v1494, %v1513
        %v1518 = vmul.f32 %v1496, %v1514
        %v1519 = vmul.f32 %v1498, %v1515
        %v1520 = vmul.f32 %v1500, %v1516
        %1522 = vset.pattern.permute.xlu0 0
        %1523 = vperm.xlu0 %1522, %v570
        %v1524 = vpop.permute.xlu0 %1523
        %v1526 = vmul.f32 %v1517, %v1524
        %v1527 = vmul.f32 %v1518, %v1524
        %v1528 = vmul.f32 %v1519, %v1524
        %v1529 = vmul.f32 %v1520, %v1524
        %v1530 = vpack.c.bf16 %v1526, %v1526
        %v1531 = vpack.c.bf16 %v1527, %v1527
        %v1532 = vpack.c.bf16 %v1528, %v1528
        %v1533 = vpack.c.bf16 %v1529, %v1529
        %v1534 = vpack.c.bf16 %v1117, %v1117
        %v1535 = vpack.c.bf16 %v1169, %v1169
        %v1536 = vpack.c.bf16 %v1221, %v1221
        %v1537 = vpack.c.bf16 %v1273, %v1273
        %v1539 = vsel %vm1292, %v1530, 0
        %vm1541 = vcmask 1043456
        %v1543 = vsel %vm1541, %v1534, 0
        %1545 = vmatprep.subr.bf16.mxu0 0
        %1546 = vmatpush1.bf16.msra.mxu0 %v1543
        %1547 = vmatprep.subr.bf16.mxu0 0
        %1548 = vmatpush1.bf16.msra.mxu0 0
        %1549 = vmatprep.subr.bf16.mxu0 0
        %1550 = vmatpush1.bf16.msra.mxu0 0
        %1551 = vmatprep.subr.bf16.mxu0 0
        %1552 = vmatpush1.bf16.msra.mxu0 0
        %1553 = vmatprep.subr.bf16.mxu0 0
        %1554 = vmatpush1.bf16.msra.mxu0 0
        %1555 = vmatprep.subr.bf16.mxu0 0
        %1556 = vmatpush1.bf16.msra.mxu0 0
        %1557 = vmatprep.subr.bf16.mxu0 0
        %1558 = vmatpush1.bf16.msra.mxu0 0
        %1559 = vmatprep.subr.bf16.mxu0 0
        %1560 = vmatpush1.bf16.msra.mxu0 0
        %1561 = vmatprep.subr.bf16.mxu0 0
        %1562 = vmatpush1.bf16.msra.mxu0 0
        %1563 = vmatprep.subr.bf16.mxu0 0
        %1564 = vmatpush1.bf16.msra.mxu0 0
        %1565 = vmatprep.subr.bf16.mxu0 0
        %1566 = vmatpush1.bf16.msra.mxu0 0
        %1567 = vmatprep.subr.bf16.mxu0 0
        %1568 = vmatpush1.bf16.msra.mxu0 0
        %1569 = vmatprep.subr.bf16.mxu0 0
        %1570 = vmatpush1.bf16.msra.mxu0 0
        %1571 = vmatprep.subr.bf16.mxu0 0
        %1572 = vmatpush1.bf16.msra.mxu0 0
        %1573 = vmatprep.subr.bf16.mxu0 0
        %1574 = vmatpush1.bf16.msra.mxu0 0
        %1575 = vmatprep.subr.bf16.mxu0 0
        %1576 = vmatpush1.bf16.msra.mxu0 0
        %1577 = vmatprep.mubr.bf16.mxu0 0
        %1578 = vmatmul.mubr.bf16.gmra.mrb[0].mxu0 %v1539
        %v1579 = vpop.f32.mrb[0].mxu0
        %v1580 = vadd.f32 0.0, %v1579
        %v1581 = vpop.f32.mrb[0].mxu0
        %v1582 = vpop.f32.mrb[0].mxu0
        %v1583 = vpop.f32.mrb[0].mxu0
        %1584 = vdwg.mxu0
        %v1586 = vsel %vm1292, %v1531, 0
        %v1589 = vsel %vm1541, %v1535, 0
        %1591 = vmatprep.subr.bf16.mxu0 0
        %1592 = vmatpush1.bf16.msra.mxu0 %v1589
        %1593 = vmatprep.subr.bf16.mxu0 0
        %1594 = vmatpush1.bf16.msra.mxu0 0
        %1595 = vmatprep.subr.bf16.mxu0 0
        %1596 = vmatpush1.bf16.msra.mxu0 0
        %1597 = vmatprep.subr.bf16.mxu0 0
        %1598 = vmatpush1.bf16.msra.mxu0 0
        %1599 = vmatprep.subr.bf16.mxu0 0
        %1600 = vmatpush1.bf16.msra.mxu0 0
        %1601 = vmatprep.subr.bf16.mxu0 0
        %1602 = vmatpush1.bf16.msra.mxu0 0
        %1603 = vmatprep.subr.bf16.mxu0 0
        %1604 = vmatpush1.bf16.msra.mxu0 0
        %1605 = vmatprep.subr.bf16.mxu0 0
        %1606 = vmatpush1.bf16.msra.mxu0 0
        %1607 = vmatprep.subr.bf16.mxu0 0
        %1608 = vmatpush1.bf16.msra.mxu0 0
        %1609 = vmatprep.subr.bf16.mxu0 0
        %1610 = vmatpush1.bf16.msra.mxu0 0
        %1611 = vmatprep.subr.bf16.mxu0 0
        %1612 = vmatpush1.bf16.msra.mxu0 0
        %1613 = vmatprep.subr.bf16.mxu0 0
        %1614 = vmatpush1.bf16.msra.mxu0 0
        %1615 = vmatprep.subr.bf16.mxu0 0
        %1616 = vmatpush1.bf16.msra.mxu0 0
        %1617 = vmatprep.subr.bf16.mxu0 0
        %1618 = vmatpush1.bf16.msra.mxu0 0
        %1619 = vmatprep.subr.bf16.mxu0 0
        %1620 = vmatpush1.bf16.msra.mxu0 0
        %1621 = vmatprep.subr.bf16.mxu0 0
        %1622 = vmatpush1.bf16.msra.mxu0 0
        %1623 = vmatprep.mubr.bf16.mxu0 0
        %1624 = vmatmul.mubr.bf16.gmra.mrb[0].mxu0 %v1586
        %v1625 = vpop.f32.mrb[0].mxu0
        %v1626 = vadd.f32 0.0, %v1625
        %v1627 = vpop.f32.mrb[0].mxu0
        %v1628 = vpop.f32.mrb[0].mxu0
        %v1629 = vpop.f32.mrb[0].mxu0
        %1630 = vdwg.mxu0
        %v1632 = vsel %vm1292, %v1532, 0
        %v1635 = vsel %vm1541, %v1536, 0
        %1637 = vmatprep.subr.bf16.mxu0 0
        %1638 = vmatpush1.bf16.msra.mxu0 %v1635
        %1639 = vmatprep.subr.bf16.mxu0 0
        %1640 = vmatpush1.bf16.msra.mxu0 0
        %1641 = vmatprep.subr.bf16.mxu0 0
        %1642 = vmatpush1.bf16.msra.mxu0 0
        %1643 = vmatprep.subr.bf16.mxu0 0
        %1644 = vmatpush1.bf16.msra.mxu0 0
        %1645 = vmatprep.subr.bf16.mxu0 0
        %1646 = vmatpush1.bf16.msra.mxu0 0
        %1647 = vmatprep.subr.bf16.mxu0 0
        %1648 = vmatpush1.bf16.msra.mxu0 0
        %1649 = vmatprep.subr.bf16.mxu0 0
        %1650 = vmatpush1.bf16.msra.mxu0 0
        %1651 = vmatprep.subr.bf16.mxu0 0
        %1652 = vmatpush1.bf16.msra.mxu0 0
        %1653 = vmatprep.subr.bf16.mxu0 0
        %1654 = vmatpush1.bf16.msra.mxu0 0
        %1655 = vmatprep.subr.bf16.mxu0 0
        %1656 = vmatpush1.bf16.msra.mxu0 0
        %1657 = vmatprep.subr.bf16.mxu0 0
        %1658 = vmatpush1.bf16.msra.mxu0 0
        %1659 = vmatprep.subr.bf16.mxu0 0
        %1660 = vmatpush1.bf16.msra.mxu0 0
        %1661 = vmatprep.subr.bf16.mxu0 0
        %1662 = vmatpush1.bf16.msra.mxu0 0
        %1663 = vmatprep.subr.bf16.mxu0 0
        %1664 = vmatpush1.bf16.msra.mxu0 0
        %1665 = vmatprep.subr.bf16.mxu0 0
        %1666 = vmatpush1.bf16.msra.mxu0 0
        %1667 = vmatprep.subr.bf16.mxu0 0
        %1668 = vmatpush1.bf16.msra.mxu0 0
        %1669 = vmatprep.mubr.bf16.mxu0 0
        %1670 = vmatmul.mubr.bf16.gmra.mrb[0].mxu0 %v1632
        %v1671 = vpop.f32.mrb[0].mxu0
        %v1672 = vadd.f32 0.0, %v1671
        %v1673 = vpop.f32.mrb[0].mxu0
        %v1674 = vpop.f32.mrb[0].mxu0
        %v1675 = vpop.f32.mrb[0].mxu0
        %1676 = vdwg.mxu0
        %v1678 = vsel %vm1292, %v1533, 0
        %v1681 = vsel %vm1541, %v1537, 0
        %1683 = vmatprep.subr.bf16.mxu0 0
        %1684 = vmatpush1.bf16.msra.mxu0 %v1681
        %1685 = vmatprep.subr.bf16.mxu0 0
        %1686 = vmatpush1.bf16.msra.mxu0 0
        %1687 = vmatprep.subr.bf16.mxu0 0
        %1688 = vmatpush1.bf16.msra.mxu0 0
        %1689 = vmatprep.subr.bf16.mxu0 0
        %1690 = vmatpush1.bf16.msra.mxu0 0
        %1691 = vmatprep.subr.bf16.mxu0 0
        %1692 = vmatpush1.bf16.msra.mxu0 0
        %1693 = vmatprep.subr.bf16.mxu0 0
        %1694 = vmatpush1.bf16.msra.mxu0 0
        %1695 = vmatprep.subr.bf16.mxu0 0
        %1696 = vmatpush1.bf16.msra.mxu0 0
        %1697 = vmatprep.subr.bf16.mxu0 0
        %1698 = vmatpush1.bf16.msra.mxu0 0
        %1699 = vmatprep.subr.bf16.mxu0 0
        %1700 = vmatpush1.bf16.msra.mxu0 0
        %1701 = vmatprep.subr.bf16.mxu0 0
        %1702 = vmatpush1.bf16.msra.mxu0 0
        %1703 = vmatprep.subr.bf16.mxu0 0
        %1704 = vmatpush1.bf16.msra.mxu0 0
        %1705 = vmatprep.subr.bf16.mxu0 0
        %1706 = vmatpush1.bf16.msra.mxu0 0
        %1707 = vmatprep.subr.bf16.mxu0 0
        %1708 = vmatpush1.bf16.msra.mxu0 0
        %1709 = vmatprep.subr.bf16.mxu0 0
        %1710 = vmatpush1.bf16.msra.mxu0 0
        %1711 = vmatprep.subr.bf16.mxu0 0
        %1712 = vmatpush1.bf16.msra.mxu0 0
        %1713 = vmatprep.subr.bf16.mxu0 0
        %1714 = vmatpush1.bf16.msra.mxu0 0
        %1715 = vmatprep.mubr.bf16.mxu0 0
        %1716 = vmatmul.mubr.bf16.gmra.mrb[0].mxu0 %v1678
        %v1717 = vpop.f32.mrb[0].mxu0
        %v1718 = vadd.f32 0.0, %v1717
        %v1719 = vpop.f32.mrb[0].mxu0
        %v1720 = vpop.f32.mrb[0].mxu0
        %v1721 = vpop.f32.mrb[0].mxu0
        %1722 = vdwg.mxu0
        %v1723 = vpack.c.bf16 %v1580, %v1580
        %v1724 = vpack.c.bf16 %v1626, %v1626
        %v1725 = vpack.c.bf16 %v1672, %v1672
        %v1726 = vpack.c.bf16 %v1718, %v1718
        %v1728 = vsel %vm1292, %v1723, 0
        %v1731 = vsel %vm1541, %v550, 0
        %1733 = vmatprep.subr.bf16.mxu0 0
        %1734 = vmatpush1.bf16.msra.mxu0 %v1731
        %1735 = vmatprep.subr.bf16.mxu0 0
        %1736 = vmatpush1.bf16.msra.mxu0 0
        %1737 = vmatprep.subr.bf16.mxu0 0
        %1738 = vmatpush1.bf16.msra.mxu0 0
        %1739 = vmatprep.subr.bf16.mxu0 0
        %1740 = vmatpush1.bf16.msra.mxu0 0
        %1741 = vmatprep.subr.bf16.mxu0 0
        %1742 = vmatpush1.bf16.msra.mxu0 0
        %1743 = vmatprep.subr.bf16.mxu0 0
        %1744 = vmatpush1.bf16.msra.mxu0 0
        %1745 = vmatprep.subr.bf16.mxu0 0
        %1746 = vmatpush1.bf16.msra.mxu0 0
        %1747 = vmatprep.subr.bf16.mxu0 0
        %1748 = vmatpush1.bf16.msra.mxu0 0
        %1749 = vmatprep.subr.bf16.mxu0 0
        %1750 = vmatpush1.bf16.msra.mxu0 0
        %1751 = vmatprep.subr.bf16.mxu0 0
        %1752 = vmatpush1.bf16.msra.mxu0 0
        %1753 = vmatprep.subr.bf16.mxu0 0
        %1754 = vmatpush1.bf16.msra.mxu0 0
        %1755 = vmatprep.subr.bf16.mxu0 0
        %1756 = vmatpush1.bf16.msra.mxu0 0
        %1757 = vmatprep.subr.bf16.mxu0 0
        %1758 = vmatpush1.bf16.msra.mxu0 0
        %1759 = vmatprep.subr.bf16.mxu0 0
        %1760 = vmatpush1.bf16.msra.mxu0 0
        %1761 = vmatprep.subr.bf16.mxu0 0
        %1762 = vmatpush1.bf16.msra.mxu0 0
        %1763 = vmatprep.subr.bf16.mxu0 0
        %1764 = vmatpush1.bf16.msra.mxu0 0
        %1765 = vmatprep.mubr.bf16.mxu0 0
        %1766 = vmatmul.mubr.bf16.gmra.mrb[0].mxu0 %v1728
        %v1767 = vpop.f32.mrb[0].mxu0
        %v1768 = vadd.f32 0.0, %v1767
        %v1769 = vpop.f32.mrb[0].mxu0
        %v1770 = vpop.f32.mrb[0].mxu0
        %v1771 = vpop.f32.mrb[0].mxu0
        %1772 = vdwg.mxu0
        %v1774 = vsel %vm1292, %v1724, 0
        %v1777 = vsel %vm1541, %v551, 0
        %1779 = vmatprep.subr.bf16.mxu0 0
        %1780 = vmatpush1.bf16.msra.mxu0 %v1777
        %1781 = vmatprep.subr.bf16.mxu0 0
        %1782 = vmatpush1.bf16.msra.mxu0 0
        %1783 = vmatprep.subr.bf16.mxu0 0
        %1784 = vmatpush1.bf16.msra.mxu0 0
        %1785 = vmatprep.subr.bf16.mxu0 0
        %1786 = vmatpush1.bf16.msra.mxu0 0
        %1787 = vmatprep.subr.bf16.mxu0 0
        %1788 = vmatpush1.bf16.msra.mxu0 0
        %1789 = vmatprep.subr.bf16.mxu0 0
        %1790 = vmatpush1.bf16.msra.mxu0 0
        %1791 = vmatprep.subr.bf16.mxu0 0
        %1792 = vmatpush1.bf16.msra.mxu0 0
        %1793 = vmatprep.subr.bf16.mxu0 0
        %1794 = vmatpush1.bf16.msra.mxu0 0
        %1795 = vmatprep.subr.bf16.mxu0 0
        %1796 = vmatpush1.bf16.msra.mxu0 0
        %1797 = vmatprep.subr.bf16.mxu0 0
        %1798 = vmatpush1.bf16.msra.mxu0 0
        %1799 = vmatprep.subr.bf16.mxu0 0
        %1800 = vmatpush1.bf16.msra.mxu0 0
        %1801 = vmatprep.subr.bf16.mxu0 0
        %1802 = vmatpush1.bf16.msra.mxu0 0
        %1803 = vmatprep.subr.bf16.mxu0 0
        %1804 = vmatpush1.bf16.msra.mxu0 0
        %1805 = vmatprep.subr.bf16.mxu0 0
        %1806 = vmatpush1.bf16.msra.mxu0 0
        %1807 = vmatprep.subr.bf16.mxu0 0
        %1808 = vmatpush1.bf16.msra.mxu0 0
        %1809 = vmatprep.subr.bf16.mxu0 0
        %1810 = vmatpush1.bf16.msra.mxu0 0
        %1811 = vmatprep.mubr.bf16.mxu0 0
        %1812 = vmatmul.mubr.bf16.gmra.mrb[0].mxu0 %v1774
        %v1813 = vpop.f32.mrb[0].mxu0
        %v1814 = vadd.f32 0.0, %v1813
        %v1815 = vpop.f32.mrb[0].mxu0
        %v1816 = vpop.f32.mrb[0].mxu0
        %v1817 = vpop.f32.mrb[0].mxu0
        %1818 = vdwg.mxu0
        %v1820 = vsel %vm1292, %v1725, 0
        %v1823 = vsel %vm1541, %v552, 0
        %1825 = vmatprep.subr.bf16.mxu0 0
        %1826 = vmatpush1.bf16.msra.mxu0 %v1823
        %1827 = vmatprep.subr.bf16.mxu0 0
        %1828 = vmatpush1.bf16.msra.mxu0 0
        %1829 = vmatprep.subr.bf16.mxu0 0
        %1830 = vmatpush1.bf16.msra.mxu0 0
        %1831 = vmatprep.subr.bf16.mxu0 0
        %1832 = vmatpush1.bf16.msra.mxu0 0
        %1833 = vmatprep.subr.bf16.mxu0 0
        %1834 = vmatpush1.bf16.msra.mxu0 0
        %1835 = vmatprep.subr.bf16.mxu0 0
        %1836 = vmatpush1.bf16.msra.mxu0 0
        %1837 = vmatprep.subr.bf16.mxu0 0
        %1838 = vmatpush1.bf16.msra.mxu0 0
        %1839 = vmatprep.subr.bf16.mxu0 0
        %1840 = vmatpush1.bf16.msra.mxu0 0
        %1841 = vmatprep.subr.bf16.mxu0 0
        %1842 = vmatpush1.bf16.msra.mxu0 0
        %1843 = vmatprep.subr.bf16.mxu0 0
        %1844 = vmatpush1.bf16.msra.mxu0 0
        %1845 = vmatprep.subr.bf16.mxu0 0
        %1846 = vmatpush1.bf16.msra.mxu0 0
        %1847 = vmatprep.subr.bf16.mxu0 0
        %1848 = vmatpush1.bf16.msra.mxu0 0
        %1849 = vmatprep.subr.bf16.mxu0 0
        %1850 = vmatpush1.bf16.msra.mxu0 0
        %1851 = vmatprep.subr.bf16.mxu0 0
        %1852 = vmatpush1.bf16.msra.mxu0 0
        %1853 = vmatprep.subr.bf16.mxu0 0
        %1854 = vmatpush1.bf16.msra.mxu0 0
        %1855 = vmatprep.subr.bf16.mxu0 0
        %1856 = vmatpush1.bf16.msra.mxu0 0
        %1857 = vmatprep.mubr.bf16.mxu0 0
        %1858 = vmatmul.mubr.bf16.gmra.mrb[0].mxu0 %v1820
        %v1859 = vpop.f32.mrb[0].mxu0
        %v1860 = vadd.f32 0.0, %v1859
        %v1861 = vpop.f32.mrb[0].mxu0
        %v1862 = vpop.f32.mrb[0].mxu0
        %v1863 = vpop.f32.mrb[0].mxu0
        %1864 = vdwg.mxu0
        %v1866 = vsel %vm1292, %v1726, 0
        %v1869 = vsel %vm1541, %v553, 0
        %1871 = vmatprep.subr.bf16.mxu0 0
        %1872 = vmatpush1.bf16.msra.mxu0 %v1869
        %1873 = vmatprep.subr.bf16.mxu0 0
        %1874 = vmatpush1.bf16.msra.mxu0 0
        %1875 = vmatprep.subr.bf16.mxu0 0
        %1876 = vmatpush1.bf16.msra.mxu0 0
        %1877 = vmatprep.subr.bf16.mxu0 0
        %1878 = vmatpush1.bf16.msra.mxu0 0
        %1879 = vmatprep.subr.bf16.mxu0 0
        %1880 = vmatpush1.bf16.msra.mxu0 0
        %1881 = vmatprep.subr.bf16.mxu0 0
        %1882 = vmatpush1.bf16.msra.mxu0 0
        %1883 = vmatprep.subr.bf16.mxu0 0
        %1884 = vmatpush1.bf16.msra.mxu0 0
        %1885 = vmatprep.subr.bf16.mxu0 0
        %1886 = vmatpush1.bf16.msra.mxu0 0
        %1887 = vmatprep.subr.bf16.mxu0 0
        %1888 = vmatpush1.bf16.msra.mxu0 0
        %1889 = vmatprep.subr.bf16.mxu0 0
        %1890 = vmatpush1.bf16.msra.mxu0 0
        %1891 = vmatprep.subr.bf16.mxu0 0
        %1892 = vmatpush1.bf16.msra.mxu0 0
        %1893 = vmatprep.subr.bf16.mxu0 0
        %1894 = vmatpush1.bf16.msra.mxu0 0
        %1895 = vmatprep.subr.bf16.mxu0 0
        %1896 = vmatpush1.bf16.msra.mxu0 0
        %1897 = vmatprep.subr.bf16.mxu0 0
        %1898 = vmatpush1.bf16.msra.mxu0 0
        %1899 = vmatprep.subr.bf16.mxu0 0
        %1900 = vmatpush1.bf16.msra.mxu0 0
        %1901 = vmatprep.subr.bf16.mxu0 0
        %1902 = vmatpush1.bf16.msra.mxu0 0
        %1903 = vmatprep.mubr.bf16.mxu0 0
        %1904 = vmatmul.mubr.bf16.gmra.mrb[0].mxu0 %v1866
        %v1905 = vpop.f32.mrb[0].mxu0
        %v1906 = vadd.f32 0.0, %v1905
        %v1907 = vpop.f32.mrb[0].mxu0
        %v1908 = vpop.f32.mrb[0].mxu0
        %v1909 = vpop.f32.mrb[0].mxu0
        %1910 = vdwg.mxu0
        %v1911 = vsel %vm608, %v1768, 0.0
        %v1912 = vsel %vm608, %v1814, 0.0
        %v1913 = vadd.f32 %v1911, %v1912
        %v1914 = vsel %vm608, %v1860, 0.0
        %v1915 = vadd.f32 %v1913, %v1914
        %v1916 = vsel %vm608, %v1906, 0.0
        %v1917 = vadd.f32 %v1915, %v1916
        %v1919 = vlaneseq
        %v1920 = vshrl.u32 %v1919, 7
        %v1921 = vsub.s32 0, %v1920
        %v1922 = vrot.slane %v566, %v1921
        %v1924 = vadd.f32 %v1917, %v1922
        %1925 = vst.msk [vmem:[%s481] sm:$0xff] %vm608, %v1924
        %s1926 = sand.u32 %s333, 1
        %s1927 = scalar_lea.sflag [#allocation3], %s1926
        %s1928 = sand.u32 %s333, 1
        %s1929 = smul.addr %s1928, 8
        %s1930 = scalar_lea.vmem [#allocation2], %s1929
        // Predicated region
        $region73: #{tpu_custom_call.1} parent=71 // pred_check
          %p1931 = pneg %p343
        $region74: #{tpu_custom_call.1} parent=71 // pred_check_branch
          %1933 = sbr.rel (%p1931) target = $region76
        $region75: #{tpu_custom_call.1} parent=71 // pred_region
          %s1935 = ssub.s32 128, 128
          %1936 = vsyncadd %s1927, %s1935
          %s1937 = smul.addr %s27, 128
          %s1938 = scalar_lea.hbm %s13, %s1937
          %s1940 = sshll.u32 %s1930, 4
          %s1941 = int_to_ptr.vmem [resolvable:$true] %s1940
          %1943 = dma.vmem_to_hbm [thread:$0]  %s1941, 128, %s1938, %s1927
        $region76: #{tpu_custom_call.1} parent=71 // pred_fallthru
          _
      $region72: #{tpu_custom_call.1} parent=5 // pred_fallthru
        _
      %p1944 = scmp.le.s32.totalorder 2, %s22
      // Predicated region
      $region77: #{tpu_custom_call.1} parent=5 // pred_check
        %p1945 = pneg %p1944
      $region78: #{tpu_custom_call.1} parent=5 // pred_check_branch
        %1947 = sbr.rel (%p1945) target = $region80
      $region79: #{tpu_custom_call.1} parent=5 // pred_region
        %s1948 = ssub.s32 %s22, 2
        // Predicated region
        $region81: #{tpu_custom_call.1} parent=79 // pred_check
          %p1949 = pneg %p349
        $region82: #{tpu_custom_call.1} parent=79 // pred_check_branch
          %1951 = sbr.rel (%p1949) target = $region84
        $region83: #{tpu_custom_call.1} parent=79 // pred_region
          %s1952 = sand.u32 %s334, 1
          %s1953 = scalar_lea.sflag [#allocation3], %s1952
          %s1954 = sand.u32 %s334, 1
          %s1955 = smul.addr %s1954, 8
          %s1956 = scalar_lea.vmem [#allocation2], %s1955
          %1957 = dma.done %s1953, 128
        $region84: #{tpu_custom_call.1} parent=79 // pred_fallthru
          _
      $region80: #{tpu_custom_call.1} parent=5 // pred_fallthru
        _
    $region6: #{tpu_custom_call.1} parent=1 // loop_footer
      %s26 = sadd.s32 1, %s22
    $region7: #{tpu_custom_call.1} parent=1 // loop_footer_branch
      %21 = sbr.rel target = $region3
    $region8: #{tpu_custom_call.1} parent=1 // loop_exit
      _
    %1958 = vsyncpa [#allocation3], 1
    %s1959 = scalar_lea.sflag [#allocation3], 1
    %1960 = vsyncpa %s1959, 1

</llo_original>
